<compile_context>
chip_gen: v7x
topology: tpu7x:2x2x1
jax: 0.10.0
libtpu: 0.0.40
codegen_flags: <defaults>
</compile_context>

<pallas_src>
import numpy as np
import jax
import jax.numpy as jnp
from jax import lax
from jax.experimental import pallas as pl
from jax.experimental.pallas import tpu as pltpu

# ----------------------------- config ---------------------------------------
VOCAB_SIZE = 16
EMB_DIM = 16
N_HIDDEN = 32
NUM_CLASSES = 2
BATCH = 2
SEQ_LEN = 8


# --------------------------- shared cell math --------------------------------
def _lstm_cell(gates, c_prev, H):
    """LSTM cell update. Gate column layout is [i | f | o | g]:
    sigmoid on the first 3H columns, tanh on the last H columns."""
    s = jax.nn.sigmoid(gates[:, : 3 * H])
    g = jnp.tanh(gates[:, 3 * H:])
    i_g = s[:, 0:H]
    f_g = s[:, H:2 * H]
    o_g = s[:, 2 * H:3 * H]
    c_new = f_g * c_prev + i_g * g
    h_new = o_g * jnp.tanh(c_new)
    return h_new, c_new


# --------------------------- fused Pallas kernel ------------------------------
def fused_bilstm_attention_kernel(
        ids_ref,      # SMEM (B, S) int32   -- scalar prefetch (token ids)
        emb_ref,      # VMEM (V, E)   bf16  -- embedding table
        w_in_ref,     # VMEM (E, 8H)  bf16  -- [wih_f | wih_b], gates [i|f|o|g]
        b_in_ref,     # VMEM (1, 8H)  f32   -- [b_f | b_b] (b_ih + b_hh)
        whh_f_ref,    # VMEM (H, 4H)  bf16
        whh_b_ref,    # VMEM (H, 4H)  bf16
        wout_ref,     # VMEM (2H, C)  bf16
        bout_ref,     # VMEM (1, C)   f32
        logits_ref,   # out  (B, C)   f32
        attn_ref):    # out  (B, S)   f32
    B, S = attn_ref.shape
    V, _E = emb_ref.shape
    H = whh_f_ref.shape[0]
    G = 4 * H

    # ---- embedding gather as a one-hot matmul (time-major rows r = t*B + b) ----
    iota_v = lax.broadcasted_iota(jnp.int32, (1, V), 1)
    onehot_rows = []
    for t in range(S):
        for b in range(B):
            tok = ids_ref[b, t]                                 # SMEM scalar read
            onehot_rows.append((iota_v == tok).astype(jnp.float32))
    onehot = jnp.concatenate(onehot_rows, axis=0)               # (S*B, V)
    emb_tm = jnp.dot(onehot.astype(jnp.bfloat16), emb_ref[...],
                     preferred_element_type=jnp.float32)        # (S*B, E)

    # ---- hoisted input-to-gate projection for BOTH directions (one matmul) ----
    gates_x = jnp.dot(emb_tm.astype(jnp.bfloat16), w_in_ref[...],
                      preferred_element_type=jnp.float32) + b_in_ref[...]   # (S*B, 8H)

    whh_f = whh_f_ref[...]
    whh_b = whh_b_ref[...]

    h_f = jnp.zeros((B, H), jnp.float32)
    c_f = jnp.zeros((B, H), jnp.float32)
    h_b = jnp.zeros((B, H), jnp.float32)
    c_b = jnp.zeros((B, H), jnp.float32)
    hs_f = [None] * S
    hs_b = [None] * S

    # ---- fully unrolled recurrence; fwd & bwd interleaved (independent chains) ----
    for k in range(S):
        tf = k
        tb = S - 1 - k
        gx_f = gates_x[tf * B:(tf + 1) * B, 0:G]                # static slices
        gx_b = gates_x[tb * B:(tb + 1) * B, G:2 * G]
        gf = gx_f + jnp.dot(h_f.astype(jnp.bfloat16), whh_f,
                            preferred_element_type=jnp.float32)
        gb = gx_b + jnp.dot(h_b.astype(jnp.bfloat16), whh_b,
                            preferred_element_type=jnp.float32)
        h_f, c_f = _lstm_cell(gf, c_f, H)
        h_b, c_b = _lstm_cell(gb, c_b, H)
        hs_f[tf] = h_f
        hs_b[tb] = h_b

    # ---- torch: final_hidden_state.view(-1, 2H) (faithful raw .view reshape) ----
    # Flat layout is [h_f rows ..., h_b rows ...]; hidden row r = rows 2r,2r+1 concatenated.
    rows = [h_f[i:i + 1, :] for i in range(B)] + [h_b[i:i + 1, :] for i in range(B)]
    hidden = jnp.concatenate(
        [jnp.concatenate([rows[2 * r], rows[2 * r + 1]], axis=1) for r in range(B)],
        axis=0)                                                  # (B, 2H)

    # ---- attention over the sequence (everything stays on-chip) ----
    lo = [jnp.concatenate([hs_f[t], hs_b[t]], axis=1) for t in range(S)]   # (B, 2H) each
    scores = jnp.concatenate(
        [jnp.sum(lo[t] * hidden, axis=1, keepdims=True) for t in range(S)],
        axis=1)                                                  # (B, S)
    m = jnp.max(scores, axis=1, keepdims=True)
    e = jnp.exp(scores - m)
    soft = e * pl.reciprocal(jnp.sum(e, axis=1, keepdims=True), approx=True)

    context = lo[0] * soft[:, 0:1]
    for t in range(1, S):
        context = context + lo[t] * soft[:, t:t + 1]             # (B, 2H)

    logits = jnp.dot(context.astype(jnp.bfloat16), wout_ref[...],
                     preferred_element_type=jnp.float32) + bout_ref[...]
    logits_ref[...] = logits
    attn_ref[...] = soft


# ------------------------------- wrapper --------------------------------------
def _full_vmem_spec(shape):
    """Whole-array VMEM block; index_map also receives the scalar-prefetch ref."""
    zeros = (0,) * len(shape)
    return pl.BlockSpec(shape, lambda i, ids, _z=zeros: _z)


@jax.jit
def bilstm_attention_forward(x_idx, params):
    """x_idx: int32 token ids of shape (B, S). Returns (logits, attention)."""
    B, S = x_idx.shape
    operands = (
        params["embedding"],   # (V, E)   bf16
        params["w_in"],        # (E, 8H)  bf16
        params["b_in"],        # (1, 8H)  f32
        params["whh_f"],       # (H, 4H)  bf16
        params["whh_b"],       # (H, 4H)  bf16
        params["wout"],        # (2H, C)  bf16
        params["bout"],        # (1, C)   f32
    )
    grid_spec = pltpu.PrefetchScalarGridSpec(
        num_scalar_prefetch=1,
        grid=(1,),
        in_specs=[_full_vmem_spec(a.shape) for a in operands],
        out_specs=(_full_vmem_spec((B, NUM_CLASSES)), _full_vmem_spec((B, S))),
    )
    logits, attn = pl.pallas_call(
        fused_bilstm_attention_kernel,
        out_shape=(jax.ShapeDtypeStruct((B, NUM_CLASSES), jnp.float32),
                   jax.ShapeDtypeStruct((B, S), jnp.float32)),
        grid_spec=grid_spec,
        compiler_params=pltpu.CompilerParams(
            dimension_semantics=("arbitrary",)),
    )(x_idx.astype(jnp.int32), *operands)
    return logits, attn


# ----------------------- pure-JAX reference (same math) -----------------------
def reference_forward(x_idx, params):
    B, S = x_idx.shape
    H = N_HIDDEN
    G = 4 * H
    emb = jnp.take(params["embedding"].astype(jnp.float32), x_idx, axis=0)  # (B,S,E)
    gx = lax.dot(emb.reshape(B * S, -1).astype(jnp.bfloat16), params["w_in"],
                 preferred_element_type=jnp.float32) + params["b_in"]
    gx = gx.reshape(B, S, 2 * G)

    h_f = jnp.zeros((B, H), jnp.float32); c_f = h_f
    h_b = jnp.zeros((B, H), jnp.float32); c_b = h_b
    hs_f = [None] * S
    hs_b = [None] * S
    for k in range(S):
        tf, tb = k, S - 1 - k
        gf = gx[:, tf, 0:G] + lax.dot(h_f.astype(jnp.bfloat16), params["whh_f"],
                                      preferred_element_type=jnp.float32)
        gb = gx[:, tb, G:2 * G] + lax.dot(h_b.astype(jnp.bfloat16), params["whh_b"],
                                          preferred_element_type=jnp.float32)
        h_f, c_f = _lstm_cell(gf, c_f, H)
        h_b, c_b = _lstm_cell(gb, c_b, H)
        hs_f[tf] = h_f
        hs_b[tb] = h_b

    lstm_out = jnp.stack([jnp.concatenate([hs_f[t], hs_b[t]], axis=1)
                          for t in range(S)], axis=1)                       # (B,S,2H)
    # torch's final_hidden_state.view(-1, 2H) quirk, reproduced exactly
    hidden = jnp.concatenate([h_f, h_b], axis=0).reshape(-1, 2 * H)          # (B, 2H)
    scores = jnp.sum(lstm_out * hidden[:, None, :], axis=2)                  # (B, S)
    soft = jax.nn.softmax(scores, axis=1)
    context = jnp.sum(lstm_out * soft[:, :, None], axis=1)                   # (B, 2H)
    logits = lax.dot(context.astype(jnp.bfloat16), params["wout"],
                     preferred_element_type=jnp.float32) + params["bout"]
    return logits, soft


# --------------------------- deterministic params -----------------------------
def init_params(key):
    H, E, V, C = N_HIDDEN, EMB_DIM, VOCAB_SIZE, NUM_CLASSES
    ks = jax.random.split(key, 12)
    k_lstm = 1.0 / np.sqrt(H)
    k_lin = 1.0 / np.sqrt(2 * H)
    u = lambda k, shape, bound: jax.random.uniform(
        k, shape, jnp.float32, minval=-bound, maxval=bound)
    # nn.LSTM weights stored transposed for x @ W; gate order [i|f|o|g].
    wih_f = u(ks[1], (E, 4 * H), k_lstm)
    wih_b = u(ks[2], (E, 4 * H), k_lstm)
    b_f = u(ks[3], (1, 4 * H), k_lstm) + u(ks[4], (1, 4 * H), k_lstm)   # b_ih + b_hh
    b_b = u(ks[5], (1, 4 * H), k_lstm) + u(ks[6], (1, 4 * H), k_lstm)
    return {
        # nn.Embedding(vocab_size, embedding_dim): N(0, 1)
        "embedding": jax.random.normal(ks[0], (V, E), jnp.float32).astype(jnp.bfloat16),
        "w_in": jnp.concatenate([wih_f, wih_b], axis=1).astype(jnp.bfloat16),  # (E, 8H)
        "b_in": jnp.concatenate([b_f, b_b], axis=1),                           # (1, 8H) f32
        "whh_f": u(ks[7], (H, 4 * H), k_lstm).astype(jnp.bfloat16),
        "whh_b": u(ks[8], (H, 4 * H), k_lstm).astype(jnp.bfloat16),
        # nn.Linear(2H, num_classes), stored transposed
        "wout": u(ks[9], (2 * H, C), k_lin).astype(jnp.bfloat16),
        "bout": u(ks[10], (1, C), k_lin),
    }


if __name__ == "__main__":
    key = jax.random.PRNGKey(0)
    pkey, xkey = jax.random.split(key)
    params = init_params(pkey)

    # token indices, like the PyTorch module's LongTensor input
    x = jax.random.randint(xkey, (BATCH, SEQ_LEN), 0, VOCAB_SIZE, dtype=jnp.int32)

    logits, attention = bilstm_attention_forward(x, params)
    logits = jax.block_until_ready(logits)
    attention = jax.block_until_ready(attention)

    ref_logits, ref_attn = reference_forward(x, params)

    assert logits.shape == (BATCH, NUM_CLASSES)
    assert attention.shape == (BATCH, SEQ_LEN)
    assert np.allclose(np.asarray(attention).sum(axis=1), 1.0, atol=5e-3)
    assert np.allclose(np.asarray(logits), np.asarray(ref_logits), atol=1e-2, rtol=1e-2)
    assert np.allclose(np.asarray(attention), np.asarray(ref_attn), atol=1e-2, rtol=1e-2)
    print("KERNEL_OK")
</pallas_src>

<mosaic_0001>
module attributes {stable_mosaic.version = 11 : i64} {
  func.func @fused_bilstm_attention_kernel(%arg0: i32, %arg1: memref<2x8xi32, #tpu.memory_space<smem>>, %arg2: memref<16x16xbf16, #tpu.memory_space<vmem>>, %arg3: memref<16x256xbf16, #tpu.memory_space<vmem>>, %arg4: memref<1x256xf32, #tpu.memory_space<vmem>>, %arg5: memref<32x128xbf16, #tpu.memory_space<vmem>>, %arg6: memref<32x128xbf16, #tpu.memory_space<vmem>>, %arg7: memref<64x2xbf16, #tpu.memory_space<vmem>>, %arg8: memref<1x2xf32, #tpu.memory_space<vmem>>, %arg9: memref<2x2xf32, #tpu.memory_space<vmem>>, %arg10: memref<2x8xf32, #tpu.memory_space<vmem>>) attributes {dimension_semantics = [#tpu.dimension_semantics<arbitrary>], iteration_bounds = array<i64: 1>, scalar_prefetch = 1 : i64, scratch_operands = 0 : i64, tpu.core_type = #tpu.core_type<tc>, window_params = [{pipeline_mode = #tpu.pipeline_mode<synchronous>, transform_indices = @transform_0, window_bounds = array<i64: 16, 16>}, {pipeline_mode = #tpu.pipeline_mode<synchronous>, transform_indices = @transform_1, window_bounds = array<i64: 16, 256>}, {pipeline_mode = #tpu.pipeline_mode<synchronous>, transform_indices = @transform_2, window_bounds = array<i64: 1, 256>}, {pipeline_mode = #tpu.pipeline_mode<synchronous>, transform_indices = @transform_3, window_bounds = array<i64: 32, 128>}, {pipeline_mode = #tpu.pipeline_mode<synchronous>, transform_indices = @transform_4, window_bounds = array<i64: 32, 128>}, {pipeline_mode = #tpu.pipeline_mode<synchronous>, transform_indices = @transform_5, window_bounds = array<i64: 64, 2>}, {pipeline_mode = #tpu.pipeline_mode<synchronous>, transform_indices = @transform_6, window_bounds = array<i64: 1, 2>}, {pipeline_mode = #tpu.pipeline_mode<synchronous>, transform_indices = @transform_7, window_bounds = array<i64: 2, 2>}, {pipeline_mode = #tpu.pipeline_mode<synchronous>, transform_indices = @transform_8, window_bounds = array<i64: 2, 8>}]} {
    %0 = tpu.iota {dimensions = array<i32: 1>} : vector<1x16xi32>
    %c0 = arith.constant 0 : index
    %c0_0 = arith.constant 0 : index
    %1 = memref.load %arg1[%c0, %c0_0] : memref<2x8xi32, #tpu.memory_space<smem>>
    %2 = vector.broadcast %1 : i32 to vector<1x16xi32>
    %3 = arith.cmpi eq, %0, %2 : vector<1x16xi32>
    %4 = arith.extui %3 : vector<1x16xi1> to vector<1x16xi32>
    %5 = arith.sitofp %4 : vector<1x16xi32> to vector<1x16xf32>
    %c1 = arith.constant 1 : index
    %c0_1 = arith.constant 0 : index
    %6 = memref.load %arg1[%c1, %c0_1] : memref<2x8xi32, #tpu.memory_space<smem>>
    %7 = vector.broadcast %6 : i32 to vector<1x16xi32>
    %8 = arith.cmpi eq, %0, %7 : vector<1x16xi32>
    %9 = arith.extui %8 : vector<1x16xi1> to vector<1x16xi32>
    %10 = arith.sitofp %9 : vector<1x16xi32> to vector<1x16xf32>
    %c0_2 = arith.constant 0 : index
    %c1_3 = arith.constant 1 : index
    %11 = memref.load %arg1[%c0_2, %c1_3] : memref<2x8xi32, #tpu.memory_space<smem>>
    %12 = vector.broadcast %11 : i32 to vector<1x16xi32>
    %13 = arith.cmpi eq, %0, %12 : vector<1x16xi32>
    %14 = arith.extui %13 : vector<1x16xi1> to vector<1x16xi32>
    %15 = arith.sitofp %14 : vector<1x16xi32> to vector<1x16xf32>
    %c1_4 = arith.constant 1 : index
    %c1_5 = arith.constant 1 : index
    %16 = memref.load %arg1[%c1_4, %c1_5] : memref<2x8xi32, #tpu.memory_space<smem>>
    %17 = vector.broadcast %16 : i32 to vector<1x16xi32>
    %18 = arith.cmpi eq, %0, %17 : vector<1x16xi32>
    %19 = arith.extui %18 : vector<1x16xi1> to vector<1x16xi32>
    %20 = arith.sitofp %19 : vector<1x16xi32> to vector<1x16xf32>
    %c0_6 = arith.constant 0 : index
    %c2 = arith.constant 2 : index
    %21 = memref.load %arg1[%c0_6, %c2] : memref<2x8xi32, #tpu.memory_space<smem>>
    %22 = vector.broadcast %21 : i32 to vector<1x16xi32>
    %23 = arith.cmpi eq, %0, %22 : vector<1x16xi32>
    %24 = arith.extui %23 : vector<1x16xi1> to vector<1x16xi32>
    %25 = arith.sitofp %24 : vector<1x16xi32> to vector<1x16xf32>
    %c1_7 = arith.constant 1 : index
    %c2_8 = arith.constant 2 : index
    %26 = memref.load %arg1[%c1_7, %c2_8] : memref<2x8xi32, #tpu.memory_space<smem>>
    %27 = vector.broadcast %26 : i32 to vector<1x16xi32>
    %28 = arith.cmpi eq, %0, %27 : vector<1x16xi32>
    %29 = arith.extui %28 : vector<1x16xi1> to vector<1x16xi32>
    %30 = arith.sitofp %29 : vector<1x16xi32> to vector<1x16xf32>
    %c0_9 = arith.constant 0 : index
    %c3 = arith.constant 3 : index
    %31 = memref.load %arg1[%c0_9, %c3] : memref<2x8xi32, #tpu.memory_space<smem>>
    %32 = vector.broadcast %31 : i32 to vector<1x16xi32>
    %33 = arith.cmpi eq, %0, %32 : vector<1x16xi32>
    %34 = arith.extui %33 : vector<1x16xi1> to vector<1x16xi32>
    %35 = arith.sitofp %34 : vector<1x16xi32> to vector<1x16xf32>
    %c1_10 = arith.constant 1 : index
    %c3_11 = arith.constant 3 : index
    %36 = memref.load %arg1[%c1_10, %c3_11] : memref<2x8xi32, #tpu.memory_space<smem>>
    %37 = vector.broadcast %36 : i32 to vector<1x16xi32>
    %38 = arith.cmpi eq, %0, %37 : vector<1x16xi32>
    %39 = arith.extui %38 : vector<1x16xi1> to vector<1x16xi32>
    %40 = arith.sitofp %39 : vector<1x16xi32> to vector<1x16xf32>
    %c0_12 = arith.constant 0 : index
    %c4 = arith.constant 4 : index
    %41 = memref.load %arg1[%c0_12, %c4] : memref<2x8xi32, #tpu.memory_space<smem>>
    %42 = vector.broadcast %41 : i32 to vector<1x16xi32>
    %43 = arith.cmpi eq, %0, %42 : vector<1x16xi32>
    %44 = arith.extui %43 : vector<1x16xi1> to vector<1x16xi32>
    %45 = arith.sitofp %44 : vector<1x16xi32> to vector<1x16xf32>
    %c1_13 = arith.constant 1 : index
    %c4_14 = arith.constant 4 : index
    %46 = memref.load %arg1[%c1_13, %c4_14] : memref<2x8xi32, #tpu.memory_space<smem>>
    %47 = vector.broadcast %46 : i32 to vector<1x16xi32>
    %48 = arith.cmpi eq, %0, %47 : vector<1x16xi32>
    %49 = arith.extui %48 : vector<1x16xi1> to vector<1x16xi32>
    %50 = arith.sitofp %49 : vector<1x16xi32> to vector<1x16xf32>
    %c0_15 = arith.constant 0 : index
    %c5 = arith.constant 5 : index
    %51 = memref.load %arg1[%c0_15, %c5] : memref<2x8xi32, #tpu.memory_space<smem>>
    %52 = vector.broadcast %51 : i32 to vector<1x16xi32>
    %53 = arith.cmpi eq, %0, %52 : vector<1x16xi32>
    %54 = arith.extui %53 : vector<1x16xi1> to vector<1x16xi32>
    %55 = arith.sitofp %54 : vector<1x16xi32> to vector<1x16xf32>
    %c1_16 = arith.constant 1 : index
    %c5_17 = arith.constant 5 : index
    %56 = memref.load %arg1[%c1_16, %c5_17] : memref<2x8xi32, #tpu.memory_space<smem>>
    %57 = vector.broadcast %56 : i32 to vector<1x16xi32>
    %58 = arith.cmpi eq, %0, %57 : vector<1x16xi32>
    %59 = arith.extui %58 : vector<1x16xi1> to vector<1x16xi32>
    %60 = arith.sitofp %59 : vector<1x16xi32> to vector<1x16xf32>
    %c0_18 = arith.constant 0 : index
    %c6 = arith.constant 6 : index
    %61 = memref.load %arg1[%c0_18, %c6] : memref<2x8xi32, #tpu.memory_space<smem>>
    %62 = vector.broadcast %61 : i32 to vector<1x16xi32>
    %63 = arith.cmpi eq, %0, %62 : vector<1x16xi32>
    %64 = arith.extui %63 : vector<1x16xi1> to vector<1x16xi32>
    %65 = arith.sitofp %64 : vector<1x16xi32> to vector<1x16xf32>
    %c1_19 = arith.constant 1 : index
    %c6_20 = arith.constant 6 : index
    %66 = memref.load %arg1[%c1_19, %c6_20] : memref<2x8xi32, #tpu.memory_space<smem>>
    %67 = vector.broadcast %66 : i32 to vector<1x16xi32>
    %68 = arith.cmpi eq, %0, %67 : vector<1x16xi32>
    %69 = arith.extui %68 : vector<1x16xi1> to vector<1x16xi32>
    %70 = arith.sitofp %69 : vector<1x16xi32> to vector<1x16xf32>
    %c0_21 = arith.constant 0 : index
    %c7 = arith.constant 7 : index
    %71 = memref.load %arg1[%c0_21, %c7] : memref<2x8xi32, #tpu.memory_space<smem>>
    %72 = vector.broadcast %71 : i32 to vector<1x16xi32>
    %73 = arith.cmpi eq, %0, %72 : vector<1x16xi32>
    %74 = arith.extui %73 : vector<1x16xi1> to vector<1x16xi32>
    %75 = arith.sitofp %74 : vector<1x16xi32> to vector<1x16xf32>
    %c1_22 = arith.constant 1 : index
    %c7_23 = arith.constant 7 : index
    %76 = memref.load %arg1[%c1_22, %c7_23] : memref<2x8xi32, #tpu.memory_space<smem>>
    %77 = vector.broadcast %76 : i32 to vector<1x16xi32>
    %78 = arith.cmpi eq, %0, %77 : vector<1x16xi32>
    %79 = arith.extui %78 : vector<1x16xi1> to vector<1x16xi32>
    %80 = arith.sitofp %79 : vector<1x16xi32> to vector<1x16xf32>
    %81 = tpu.concatenate %5, %10, %15, %20, %25, %30, %35, %40, %45, %50, %55, %60, %65, %70, %75, %80 in 0 : vector<1x16xf32>, vector<1x16xf32>, vector<1x16xf32>, vector<1x16xf32>, vector<1x16xf32>, vector<1x16xf32>, vector<1x16xf32>, vector<1x16xf32>, vector<1x16xf32>, vector<1x16xf32>, vector<1x16xf32>, vector<1x16xf32>, vector<1x16xf32>, vector<1x16xf32>, vector<1x16xf32>, vector<1x16xf32> -> vector<16x16xf32>
    %82 = arith.truncf %81 : vector<16x16xf32> to vector<16x16xbf16>
    %c0_24 = arith.constant 0 : index
    %c0_25 = arith.constant 0 : index
    %83 = vector.load %arg2[%c0_24, %c0_25] : memref<16x16xbf16, #tpu.memory_space<vmem>>, vector<16x16xbf16>
    %cst = arith.constant dense<0.000000e+00> : vector<16x16xf32>
    %84 = tpu.matmul %82, %83, %cst {dimension_numbers = #tpu.dot_dimension_numbers<[1], [0], [0], [1], [0, 0, 1, 1], [], []>} : vector<16x16xbf16>, vector<16x16xbf16>, vector<16x16xf32> -> vector<16x16xf32>
    %85 = arith.truncf %84 : vector<16x16xf32> to vector<16x16xbf16>
    %c0_26 = arith.constant 0 : index
    %c0_27 = arith.constant 0 : index
    %86 = vector.load %arg3[%c0_26, %c0_27] : memref<16x256xbf16, #tpu.memory_space<vmem>>, vector<16x256xbf16>
    %cst_28 = arith.constant dense<0.000000e+00> : vector<16x256xf32>
    %87 = tpu.matmul %85, %86, %cst_28 {dimension_numbers = #tpu.dot_dimension_numbers<[1], [0], [0], [1], [0, 0, 1, 1], [], []>} : vector<16x16xbf16>, vector<16x256xbf16>, vector<16x256xf32> -> vector<16x256xf32>
    %c0_29 = arith.constant 0 : index
    %c0_30 = arith.constant 0 : index
    %88 = vector.load %arg4[%c0_29, %c0_30] : memref<1x256xf32, #tpu.memory_space<vmem>>, vector<1x256xf32>
    %89 = vector.broadcast %88 : vector<1x256xf32> to vector<16x256xf32>
    %90 = arith.addf %87, %89 : vector<16x256xf32>
    %c0_31 = arith.constant 0 : index
    %c0_32 = arith.constant 0 : index
    %91 = vector.load %arg5[%c0_31, %c0_32] : memref<32x128xbf16, #tpu.memory_space<vmem>>, vector<32x128xbf16>
    %c0_33 = arith.constant 0 : index
    %c0_34 = arith.constant 0 : index
    %92 = vector.load %arg6[%c0_33, %c0_34] : memref<32x128xbf16, #tpu.memory_space<vmem>>, vector<32x128xbf16>
    %cst_35 = arith.constant 0.000000e+00 : f32
    %93 = vector.broadcast %cst_35 : f32 to vector<2x32xf32>
    %cst_36 = arith.constant 0.000000e+00 : f32
    %94 = vector.broadcast %cst_36 : f32 to vector<2x32xf32>
    %cst_37 = arith.constant 0.000000e+00 : f32
    %95 = vector.broadcast %cst_37 : f32 to vector<2x32xf32>
    %cst_38 = arith.constant 0.000000e+00 : f32
    %96 = vector.broadcast %cst_38 : f32 to vector<2x32xf32>
    %97 = vector.extract_strided_slice %90 {offsets = [0, 0], sizes = [2, 128], strides = [1, 1]} : vector<16x256xf32> to vector<2x128xf32>
    %98 = vector.extract_strided_slice %90 {offsets = [14, 128], sizes = [2, 128], strides = [1, 1]} : vector<16x256xf32> to vector<2x128xf32>
    %99 = arith.truncf %93 : vector<2x32xf32> to vector<2x32xbf16>
    %cst_39 = arith.constant dense<0.000000e+00> : vector<2x128xf32>
    %100 = tpu.matmul %99, %91, %cst_39 {dimension_numbers = #tpu.dot_dimension_numbers<[1], [0], [0], [1], [0, 0, 1, 1], [], []>} : vector<2x32xbf16>, vector<32x128xbf16>, vector<2x128xf32> -> vector<2x128xf32>
    %101 = arith.addf %97, %100 : vector<2x128xf32>
    %102 = arith.truncf %95 : vector<2x32xf32> to vector<2x32xbf16>
    %cst_40 = arith.constant dense<0.000000e+00> : vector<2x128xf32>
    %103 = tpu.matmul %102, %92, %cst_40 {dimension_numbers = #tpu.dot_dimension_numbers<[1], [0], [0], [1], [0, 0, 1, 1], [], []>} : vector<2x32xbf16>, vector<32x128xbf16>, vector<2x128xf32> -> vector<2x128xf32>
    %104 = arith.addf %98, %103 : vector<2x128xf32>
    %105 = vector.extract_strided_slice %101 {offsets = [0, 0], sizes = [2, 96], strides = [1, 1]} : vector<2x128xf32> to vector<2x96xf32>
    %106 = arith.negf %105 : vector<2x96xf32>
    %107 = math.exp %106 : vector<2x96xf32>
    %cst_41 = arith.constant 1.000000e+00 : f32
    %108 = vector.broadcast %cst_41 : f32 to vector<2x96xf32>
    %109 = arith.addf %108, %107 : vector<2x96xf32>
    %110 = arith.divf %108, %109 : vector<2x96xf32>
    %111 = vector.extract_strided_slice %101 {offsets = [0, 96], sizes = [2, 32], strides = [1, 1]} : vector<2x128xf32> to vector<2x32xf32>
    %112 = math.tanh %111 : vector<2x32xf32>
    %113 = vector.extract_strided_slice %110 {offsets = [0, 0], sizes = [2, 32], strides = [1, 1]} : vector<2x96xf32> to vector<2x32xf32>
    %114 = vector.extract_strided_slice %110 {offsets = [0, 32], sizes = [2, 32], strides = [1, 1]} : vector<2x96xf32> to vector<2x32xf32>
    %115 = vector.extract_strided_slice %110 {offsets = [0, 64], sizes = [2, 32], strides = [1, 1]} : vector<2x96xf32> to vector<2x32xf32>
    %116 = arith.mulf %114, %94 : vector<2x32xf32>
    %117 = arith.mulf %113, %112 : vector<2x32xf32>
    %118 = arith.addf %116, %117 : vector<2x32xf32>
    %119 = math.tanh %118 : vector<2x32xf32>
    %120 = arith.mulf %115, %119 : vector<2x32xf32>
    %121 = vector.extract_strided_slice %104 {offsets = [0, 0], sizes = [2, 96], strides = [1, 1]} : vector<2x128xf32> to vector<2x96xf32>
    %122 = arith.negf %121 : vector<2x96xf32>
    %123 = math.exp %122 : vector<2x96xf32>
    %cst_42 = arith.constant 1.000000e+00 : f32
    %124 = vector.broadcast %cst_42 : f32 to vector<2x96xf32>
    %125 = arith.addf %124, %123 : vector<2x96xf32>
    %126 = arith.divf %124, %125 : vector<2x96xf32>
    %127 = vector.extract_strided_slice %104 {offsets = [0, 96], sizes = [2, 32], strides = [1, 1]} : vector<2x128xf32> to vector<2x32xf32>
    %128 = math.tanh %127 : vector<2x32xf32>
    %129 = vector.extract_strided_slice %126 {offsets = [0, 0], sizes = [2, 32], strides = [1, 1]} : vector<2x96xf32> to vector<2x32xf32>
    %130 = vector.extract_strided_slice %126 {offsets = [0, 32], sizes = [2, 32], strides = [1, 1]} : vector<2x96xf32> to vector<2x32xf32>
    %131 = vector.extract_strided_slice %126 {offsets = [0, 64], sizes = [2, 32], strides = [1, 1]} : vector<2x96xf32> to vector<2x32xf32>
    %132 = arith.mulf %130, %96 : vector<2x32xf32>
    %133 = arith.mulf %129, %128 : vector<2x32xf32>
    %134 = arith.addf %132, %133 : vector<2x32xf32>
    %135 = math.tanh %134 : vector<2x32xf32>
    %136 = arith.mulf %131, %135 : vector<2x32xf32>
    %137 = vector.extract_strided_slice %90 {offsets = [2, 0], sizes = [2, 128], strides = [1, 1]} : vector<16x256xf32> to vector<2x128xf32>
    %138 = vector.extract_strided_slice %90 {offsets = [12, 128], sizes = [2, 128], strides = [1, 1]} : vector<16x256xf32> to vector<2x128xf32>
    %139 = arith.truncf %120 : vector<2x32xf32> to vector<2x32xbf16>
    %cst_43 = arith.constant dense<0.000000e+00> : vector<2x128xf32>
    %140 = tpu.matmul %139, %91, %cst_43 {dimension_numbers = #tpu.dot_dimension_numbers<[1], [0], [0], [1], [0, 0, 1, 1], [], []>} : vector<2x32xbf16>, vector<32x128xbf16>, vector<2x128xf32> -> vector<2x128xf32>
    %141 = arith.addf %137, %140 : vector<2x128xf32>
    %142 = arith.truncf %136 : vector<2x32xf32> to vector<2x32xbf16>
    %cst_44 = arith.constant dense<0.000000e+00> : vector<2x128xf32>
    %143 = tpu.matmul %142, %92, %cst_44 {dimension_numbers = #tpu.dot_dimension_numbers<[1], [0], [0], [1], [0, 0, 1, 1], [], []>} : vector<2x32xbf16>, vector<32x128xbf16>, vector<2x128xf32> -> vector<2x128xf32>
    %144 = arith.addf %138, %143 : vector<2x128xf32>
    %145 = vector.extract_strided_slice %141 {offsets = [0, 0], sizes = [2, 96], strides = [1, 1]} : vector<2x128xf32> to vector<2x96xf32>
    %146 = arith.negf %145 : vector<2x96xf32>
    %147 = math.exp %146 : vector<2x96xf32>
    %cst_45 = arith.constant 1.000000e+00 : f32
    %148 = vector.broadcast %cst_45 : f32 to vector<2x96xf32>
    %149 = arith.addf %148, %147 : vector<2x96xf32>
    %150 = arith.divf %148, %149 : vector<2x96xf32>
    %151 = vector.extract_strided_slice %141 {offsets = [0, 96], sizes = [2, 32], strides = [1, 1]} : vector<2x128xf32> to vector<2x32xf32>
    %152 = math.tanh %151 : vector<2x32xf32>
    %153 = vector.extract_strided_slice %150 {offsets = [0, 0], sizes = [2, 32], strides = [1, 1]} : vector<2x96xf32> to vector<2x32xf32>
    %154 = vector.extract_strided_slice %150 {offsets = [0, 32], sizes = [2, 32], strides = [1, 1]} : vector<2x96xf32> to vector<2x32xf32>
    %155 = vector.extract_strided_slice %150 {offsets = [0, 64], sizes = [2, 32], strides = [1, 1]} : vector<2x96xf32> to vector<2x32xf32>
    %156 = arith.mulf %154, %118 : vector<2x32xf32>
    %157 = arith.mulf %153, %152 : vector<2x32xf32>
    %158 = arith.addf %156, %157 : vector<2x32xf32>
    %159 = math.tanh %158 : vector<2x32xf32>
    %160 = arith.mulf %155, %159 : vector<2x32xf32>
    %161 = vector.extract_strided_slice %144 {offsets = [0, 0], sizes = [2, 96], strides = [1, 1]} : vector<2x128xf32> to vector<2x96xf32>
    %162 = arith.negf %161 : vector<2x96xf32>
    %163 = math.exp %162 : vector<2x96xf32>
    %cst_46 = arith.constant 1.000000e+00 : f32
    %164 = vector.broadcast %cst_46 : f32 to vector<2x96xf32>
    %165 = arith.addf %164, %163 : vector<2x96xf32>
    %166 = arith.divf %164, %165 : vector<2x96xf32>
    %167 = vector.extract_strided_slice %144 {offsets = [0, 96], sizes = [2, 32], strides = [1, 1]} : vector<2x128xf32> to vector<2x32xf32>
    %168 = math.tanh %167 : vector<2x32xf32>
    %169 = vector.extract_strided_slice %166 {offsets = [0, 0], sizes = [2, 32], strides = [1, 1]} : vector<2x96xf32> to vector<2x32xf32>
    %170 = vector.extract_strided_slice %166 {offsets = [0, 32], sizes = [2, 32], strides = [1, 1]} : vector<2x96xf32> to vector<2x32xf32>
    %171 = vector.extract_strided_slice %166 {offsets = [0, 64], sizes = [2, 32], strides = [1, 1]} : vector<2x96xf32> to vector<2x32xf32>
    %172 = arith.mulf %170, %134 : vector<2x32xf32>
    %173 = arith.mulf %169, %168 : vector<2x32xf32>
    %174 = arith.addf %172, %173 : vector<2x32xf32>
    %175 = math.tanh %174 : vector<2x32xf32>
    %176 = arith.mulf %171, %175 : vector<2x32xf32>
    %177 = vector.extract_strided_slice %90 {offsets = [4, 0], sizes = [2, 128], strides = [1, 1]} : vector<16x256xf32> to vector<2x128xf32>
    %178 = vector.extract_strided_slice %90 {offsets = [10, 128], sizes = [2, 128], strides = [1, 1]} : vector<16x256xf32> to vector<2x128xf32>
    %179 = arith.truncf %160 : vector<2x32xf32> to vector<2x32xbf16>
    %cst_47 = arith.constant dense<0.000000e+00> : vector<2x128xf32>
    %180 = tpu.matmul %179, %91, %cst_47 {dimension_numbers = #tpu.dot_dimension_numbers<[1], [0], [0], [1], [0, 0, 1, 1], [], []>} : vector<2x32xbf16>, vector<32x128xbf16>, vector<2x128xf32> -> vector<2x128xf32>
    %181 = arith.addf %177, %180 : vector<2x128xf32>
    %182 = arith.truncf %176 : vector<2x32xf32> to vector<2x32xbf16>
    %cst_48 = arith.constant dense<0.000000e+00> : vector<2x128xf32>
    %183 = tpu.matmul %182, %92, %cst_48 {dimension_numbers = #tpu.dot_dimension_numbers<[1], [0], [0], [1], [0, 0, 1, 1], [], []>} : vector<2x32xbf16>, vector<32x128xbf16>, vector<2x128xf32> -> vector<2x128xf32>
    %184 = arith.addf %178, %183 : vector<2x128xf32>
    %185 = vector.extract_strided_slice %181 {offsets = [0, 0], sizes = [2, 96], strides = [1, 1]} : vector<2x128xf32> to vector<2x96xf32>
    %186 = arith.negf %185 : vector<2x96xf32>
    %187 = math.exp %186 : vector<2x96xf32>
    %cst_49 = arith.constant 1.000000e+00 : f32
    %188 = vector.broadcast %cst_49 : f32 to vector<2x96xf32>
    %189 = arith.addf %188, %187 : vector<2x96xf32>
    %190 = arith.divf %188, %189 : vector<2x96xf32>
    %191 = vector.extract_strided_slice %181 {offsets = [0, 96], sizes = [2, 32], strides = [1, 1]} : vector<2x128xf32> to vector<2x32xf32>
    %192 = math.tanh %191 : vector<2x32xf32>
    %193 = vector.extract_strided_slice %190 {offsets = [0, 0], sizes = [2, 32], strides = [1, 1]} : vector<2x96xf32> to vector<2x32xf32>
    %194 = vector.extract_strided_slice %190 {offsets = [0, 32], sizes = [2, 32], strides = [1, 1]} : vector<2x96xf32> to vector<2x32xf32>
    %195 = vector.extract_strided_slice %190 {offsets = [0, 64], sizes = [2, 32], strides = [1, 1]} : vector<2x96xf32> to vector<2x32xf32>
    %196 = arith.mulf %194, %158 : vector<2x32xf32>
    %197 = arith.mulf %193, %192 : vector<2x32xf32>
    %198 = arith.addf %196, %197 : vector<2x32xf32>
    %199 = math.tanh %198 : vector<2x32xf32>
    %200 = arith.mulf %195, %199 : vector<2x32xf32>
    %201 = vector.extract_strided_slice %184 {offsets = [0, 0], sizes = [2, 96], strides = [1, 1]} : vector<2x128xf32> to vector<2x96xf32>
    %202 = arith.negf %201 : vector<2x96xf32>
    %203 = math.exp %202 : vector<2x96xf32>
    %cst_50 = arith.constant 1.000000e+00 : f32
    %204 = vector.broadcast %cst_50 : f32 to vector<2x96xf32>
    %205 = arith.addf %204, %203 : vector<2x96xf32>
    %206 = arith.divf %204, %205 : vector<2x96xf32>
    %207 = vector.extract_strided_slice %184 {offsets = [0, 96], sizes = [2, 32], strides = [1, 1]} : vector<2x128xf32> to vector<2x32xf32>
    %208 = math.tanh %207 : vector<2x32xf32>
    %209 = vector.extract_strided_slice %206 {offsets = [0, 0], sizes = [2, 32], strides = [1, 1]} : vector<2x96xf32> to vector<2x32xf32>
    %210 = vector.extract_strided_slice %206 {offsets = [0, 32], sizes = [2, 32], strides = [1, 1]} : vector<2x96xf32> to vector<2x32xf32>
    %211 = vector.extract_strided_slice %206 {offsets = [0, 64], sizes = [2, 32], strides = [1, 1]} : vector<2x96xf32> to vector<2x32xf32>
    %212 = arith.mulf %210, %174 : vector<2x32xf32>
    %213 = arith.mulf %209, %208 : vector<2x32xf32>
    %214 = arith.addf %212, %213 : vector<2x32xf32>
    %215 = math.tanh %214 : vector<2x32xf32>
    %216 = arith.mulf %211, %215 : vector<2x32xf32>
    %217 = vector.extract_strided_slice %90 {offsets = [6, 0], sizes = [2, 128], strides = [1, 1]} : vector<16x256xf32> to vector<2x128xf32>
    %218 = vector.extract_strided_slice %90 {offsets = [8, 128], sizes = [2, 128], strides = [1, 1]} : vector<16x256xf32> to vector<2x128xf32>
    %219 = arith.truncf %200 : vector<2x32xf32> to vector<2x32xbf16>
    %cst_51 = arith.constant dense<0.000000e+00> : vector<2x128xf32>
    %220 = tpu.matmul %219, %91, %cst_51 {dimension_numbers = #tpu.dot_dimension_numbers<[1], [0], [0], [1], [0, 0, 1, 1], [], []>} : vector<2x32xbf16>, vector<32x128xbf16>, vector<2x128xf32> -> vector<2x128xf32>
    %221 = arith.addf %217, %220 : vector<2x128xf32>
    %222 = arith.truncf %216 : vector<2x32xf32> to vector<2x32xbf16>
    %cst_52 = arith.constant dense<0.000000e+00> : vector<2x128xf32>
    %223 = tpu.matmul %222, %92, %cst_52 {dimension_numbers = #tpu.dot_dimension_numbers<[1], [0], [0], [1], [0, 0, 1, 1], [], []>} : vector<2x32xbf16>, vector<32x128xbf16>, vector<2x128xf32> -> vector<2x128xf32>
    %224 = arith.addf %218, %223 : vector<2x128xf32>
    %225 = vector.extract_strided_slice %221 {offsets = [0, 0], sizes = [2, 96], strides = [1, 1]} : vector<2x128xf32> to vector<2x96xf32>
    %226 = arith.negf %225 : vector<2x96xf32>
    %227 = math.exp %226 : vector<2x96xf32>
    %cst_53 = arith.constant 1.000000e+00 : f32
    %228 = vector.broadcast %cst_53 : f32 to vector<2x96xf32>
    %229 = arith.addf %228, %227 : vector<2x96xf32>
    %230 = arith.divf %228, %229 : vector<2x96xf32>
    %231 = vector.extract_strided_slice %221 {offsets = [0, 96], sizes = [2, 32], strides = [1, 1]} : vector<2x128xf32> to vector<2x32xf32>
    %232 = math.tanh %231 : vector<2x32xf32>
    %233 = vector.extract_strided_slice %230 {offsets = [0, 0], sizes = [2, 32], strides = [1, 1]} : vector<2x96xf32> to vector<2x32xf32>
    %234 = vector.extract_strided_slice %230 {offsets = [0, 32], sizes = [2, 32], strides = [1, 1]} : vector<2x96xf32> to vector<2x32xf32>
    %235 = vector.extract_strided_slice %230 {offsets = [0, 64], sizes = [2, 32], strides = [1, 1]} : vector<2x96xf32> to vector<2x32xf32>
    %236 = arith.mulf %234, %198 : vector<2x32xf32>
    %237 = arith.mulf %233, %232 : vector<2x32xf32>
    %238 = arith.addf %236, %237 : vector<2x32xf32>
    %239 = math.tanh %238 : vector<2x32xf32>
    %240 = arith.mulf %235, %239 : vector<2x32xf32>
    %241 = vector.extract_strided_slice %224 {offsets = [0, 0], sizes = [2, 96], strides = [1, 1]} : vector<2x128xf32> to vector<2x96xf32>
    %242 = arith.negf %241 : vector<2x96xf32>
    %243 = math.exp %242 : vector<2x96xf32>
    %cst_54 = arith.constant 1.000000e+00 : f32
    %244 = vector.broadcast %cst_54 : f32 to vector<2x96xf32>
    %245 = arith.addf %244, %243 : vector<2x96xf32>
    %246 = arith.divf %244, %245 : vector<2x96xf32>
    %247 = vector.extract_strided_slice %224 {offsets = [0, 96], sizes = [2, 32], strides = [1, 1]} : vector<2x128xf32> to vector<2x32xf32>
    %248 = math.tanh %247 : vector<2x32xf32>
    %249 = vector.extract_strided_slice %246 {offsets = [0, 0], sizes = [2, 32], strides = [1, 1]} : vector<2x96xf32> to vector<2x32xf32>
    %250 = vector.extract_strided_slice %246 {offsets = [0, 32], sizes = [2, 32], strides = [1, 1]} : vector<2x96xf32> to vector<2x32xf32>
    %251 = vector.extract_strided_slice %246 {offsets = [0, 64], sizes = [2, 32], strides = [1, 1]} : vector<2x96xf32> to vector<2x32xf32>
    %252 = arith.mulf %250, %214 : vector<2x32xf32>
    %253 = arith.mulf %249, %248 : vector<2x32xf32>
    %254 = arith.addf %252, %253 : vector<2x32xf32>
    %255 = math.tanh %254 : vector<2x32xf32>
    %256 = arith.mulf %251, %255 : vector<2x32xf32>
    %257 = vector.extract_strided_slice %90 {offsets = [8, 0], sizes = [2, 128], strides = [1, 1]} : vector<16x256xf32> to vector<2x128xf32>
    %258 = vector.extract_strided_slice %90 {offsets = [6, 128], sizes = [2, 128], strides = [1, 1]} : vector<16x256xf32> to vector<2x128xf32>
    %259 = arith.truncf %240 : vector<2x32xf32> to vector<2x32xbf16>
    %cst_55 = arith.constant dense<0.000000e+00> : vector<2x128xf32>
    %260 = tpu.matmul %259, %91, %cst_55 {dimension_numbers = #tpu.dot_dimension_numbers<[1], [0], [0], [1], [0, 0, 1, 1], [], []>} : vector<2x32xbf16>, vector<32x128xbf16>, vector<2x128xf32> -> vector<2x128xf32>
    %261 = arith.addf %257, %260 : vector<2x128xf32>
    %262 = arith.truncf %256 : vector<2x32xf32> to vector<2x32xbf16>
    %cst_56 = arith.constant dense<0.000000e+00> : vector<2x128xf32>
    %263 = tpu.matmul %262, %92, %cst_56 {dimension_numbers = #tpu.dot_dimension_numbers<[1], [0], [0], [1], [0, 0, 1, 1], [], []>} : vector<2x32xbf16>, vector<32x128xbf16>, vector<2x128xf32> -> vector<2x128xf32>
    %264 = arith.addf %258, %263 : vector<2x128xf32>
    %265 = vector.extract_strided_slice %261 {offsets = [0, 0], sizes = [2, 96], strides = [1, 1]} : vector<2x128xf32> to vector<2x96xf32>
    %266 = arith.negf %265 : vector<2x96xf32>
    %267 = math.exp %266 : vector<2x96xf32>
    %cst_57 = arith.constant 1.000000e+00 : f32
    %268 = vector.broadcast %cst_57 : f32 to vector<2x96xf32>
    %269 = arith.addf %268, %267 : vector<2x96xf32>
    %270 = arith.divf %268, %269 : vector<2x96xf32>
    %271 = vector.extract_strided_slice %261 {offsets = [0, 96], sizes = [2, 32], strides = [1, 1]} : vector<2x128xf32> to vector<2x32xf32>
    %272 = math.tanh %271 : vector<2x32xf32>
    %273 = vector.extract_strided_slice %270 {offsets = [0, 0], sizes = [2, 32], strides = [1, 1]} : vector<2x96xf32> to vector<2x32xf32>
    %274 = vector.extract_strided_slice %270 {offsets = [0, 32], sizes = [2, 32], strides = [1, 1]} : vector<2x96xf32> to vector<2x32xf32>
    %275 = vector.extract_strided_slice %270 {offsets = [0, 64], sizes = [2, 32], strides = [1, 1]} : vector<2x96xf32> to vector<2x32xf32>
    %276 = arith.mulf %274, %238 : vector<2x32xf32>
    %277 = arith.mulf %273, %272 : vector<2x32xf32>
    %278 = arith.addf %276, %277 : vector<2x32xf32>
    %279 = math.tanh %278 : vector<2x32xf32>
    %280 = arith.mulf %275, %279 : vector<2x32xf32>
    %281 = vector.extract_strided_slice %264 {offsets = [0, 0], sizes = [2, 96], strides = [1, 1]} : vector<2x128xf32> to vector<2x96xf32>
    %282 = arith.negf %281 : vector<2x96xf32>
    %283 = math.exp %282 : vector<2x96xf32>
    %cst_58 = arith.constant 1.000000e+00 : f32
    %284 = vector.broadcast %cst_58 : f32 to vector<2x96xf32>
    %285 = arith.addf %284, %283 : vector<2x96xf32>
    %286 = arith.divf %284, %285 : vector<2x96xf32>
    %287 = vector.extract_strided_slice %264 {offsets = [0, 96], sizes = [2, 32], strides = [1, 1]} : vector<2x128xf32> to vector<2x32xf32>
    %288 = math.tanh %287 : vector<2x32xf32>
    %289 = vector.extract_strided_slice %286 {offsets = [0, 0], sizes = [2, 32], strides = [1, 1]} : vector<2x96xf32> to vector<2x32xf32>
    %290 = vector.extract_strided_slice %286 {offsets = [0, 32], sizes = [2, 32], strides = [1, 1]} : vector<2x96xf32> to vector<2x32xf32>
    %291 = vector.extract_strided_slice %286 {offsets = [0, 64], sizes = [2, 32], strides = [1, 1]} : vector<2x96xf32> to vector<2x32xf32>
    %292 = arith.mulf %290, %254 : vector<2x32xf32>
    %293 = arith.mulf %289, %288 : vector<2x32xf32>
    %294 = arith.addf %292, %293 : vector<2x32xf32>
    %295 = math.tanh %294 : vector<2x32xf32>
    %296 = arith.mulf %291, %295 : vector<2x32xf32>
    %297 = vector.extract_strided_slice %90 {offsets = [10, 0], sizes = [2, 128], strides = [1, 1]} : vector<16x256xf32> to vector<2x128xf32>
    %298 = vector.extract_strided_slice %90 {offsets = [4, 128], sizes = [2, 128], strides = [1, 1]} : vector<16x256xf32> to vector<2x128xf32>
    %299 = arith.truncf %280 : vector<2x32xf32> to vector<2x32xbf16>
    %cst_59 = arith.constant dense<0.000000e+00> : vector<2x128xf32>
    %300 = tpu.matmul %299, %91, %cst_59 {dimension_numbers = #tpu.dot_dimension_numbers<[1], [0], [0], [1], [0, 0, 1, 1], [], []>} : vector<2x32xbf16>, vector<32x128xbf16>, vector<2x128xf32> -> vector<2x128xf32>
    %301 = arith.addf %297, %300 : vector<2x128xf32>
    %302 = arith.truncf %296 : vector<2x32xf32> to vector<2x32xbf16>
    %cst_60 = arith.constant dense<0.000000e+00> : vector<2x128xf32>
    %303 = tpu.matmul %302, %92, %cst_60 {dimension_numbers = #tpu.dot_dimension_numbers<[1], [0], [0], [1], [0, 0, 1, 1], [], []>} : vector<2x32xbf16>, vector<32x128xbf16>, vector<2x128xf32> -> vector<2x128xf32>
    %304 = arith.addf %298, %303 : vector<2x128xf32>
    %305 = vector.extract_strided_slice %301 {offsets = [0, 0], sizes = [2, 96], strides = [1, 1]} : vector<2x128xf32> to vector<2x96xf32>
    %306 = arith.negf %305 : vector<2x96xf32>
    %307 = math.exp %306 : vector<2x96xf32>
    %cst_61 = arith.constant 1.000000e+00 : f32
    %308 = vector.broadcast %cst_61 : f32 to vector<2x96xf32>
    %309 = arith.addf %308, %307 : vector<2x96xf32>
    %310 = arith.divf %308, %309 : vector<2x96xf32>
    %311 = vector.extract_strided_slice %301 {offsets = [0, 96], sizes = [2, 32], strides = [1, 1]} : vector<2x128xf32> to vector<2x32xf32>
    %312 = math.tanh %311 : vector<2x32xf32>
    %313 = vector.extract_strided_slice %310 {offsets = [0, 0], sizes = [2, 32], strides = [1, 1]} : vector<2x96xf32> to vector<2x32xf32>
    %314 = vector.extract_strided_slice %310 {offsets = [0, 32], sizes = [2, 32], strides = [1, 1]} : vector<2x96xf32> to vector<2x32xf32>
    %315 = vector.extract_strided_slice %310 {offsets = [0, 64], sizes = [2, 32], strides = [1, 1]} : vector<2x96xf32> to vector<2x32xf32>
    %316 = arith.mulf %314, %278 : vector<2x32xf32>
    %317 = arith.mulf %313, %312 : vector<2x32xf32>
    %318 = arith.addf %316, %317 : vector<2x32xf32>
    %319 = math.tanh %318 : vector<2x32xf32>
    %320 = arith.mulf %315, %319 : vector<2x32xf32>
    %321 = vector.extract_strided_slice %304 {offsets = [0, 0], sizes = [2, 96], strides = [1, 1]} : vector<2x128xf32> to vector<2x96xf32>
    %322 = arith.negf %321 : vector<2x96xf32>
    %323 = math.exp %322 : vector<2x96xf32>
    %cst_62 = arith.constant 1.000000e+00 : f32
    %324 = vector.broadcast %cst_62 : f32 to vector<2x96xf32>
    %325 = arith.addf %324, %323 : vector<2x96xf32>
    %326 = arith.divf %324, %325 : vector<2x96xf32>
    %327 = vector.extract_strided_slice %304 {offsets = [0, 96], sizes = [2, 32], strides = [1, 1]} : vector<2x128xf32> to vector<2x32xf32>
    %328 = math.tanh %327 : vector<2x32xf32>
    %329 = vector.extract_strided_slice %326 {offsets = [0, 0], sizes = [2, 32], strides = [1, 1]} : vector<2x96xf32> to vector<2x32xf32>
    %330 = vector.extract_strided_slice %326 {offsets = [0, 32], sizes = [2, 32], strides = [1, 1]} : vector<2x96xf32> to vector<2x32xf32>
    %331 = vector.extract_strided_slice %326 {offsets = [0, 64], sizes = [2, 32], strides = [1, 1]} : vector<2x96xf32> to vector<2x32xf32>
    %332 = arith.mulf %330, %294 : vector<2x32xf32>
    %333 = arith.mulf %329, %328 : vector<2x32xf32>
    %334 = arith.addf %332, %333 : vector<2x32xf32>
    %335 = math.tanh %334 : vector<2x32xf32>
    %336 = arith.mulf %331, %335 : vector<2x32xf32>
    %337 = vector.extract_strided_slice %90 {offsets = [12, 0], sizes = [2, 128], strides = [1, 1]} : vector<16x256xf32> to vector<2x128xf32>
    %338 = vector.extract_strided_slice %90 {offsets = [2, 128], sizes = [2, 128], strides = [1, 1]} : vector<16x256xf32> to vector<2x128xf32>
    %339 = arith.truncf %320 : vector<2x32xf32> to vector<2x32xbf16>
    %cst_63 = arith.constant dense<0.000000e+00> : vector<2x128xf32>
    %340 = tpu.matmul %339, %91, %cst_63 {dimension_numbers = #tpu.dot_dimension_numbers<[1], [0], [0], [1], [0, 0, 1, 1], [], []>} : vector<2x32xbf16>, vector<32x128xbf16>, vector<2x128xf32> -> vector<2x128xf32>
    %341 = arith.addf %337, %340 : vector<2x128xf32>
    %342 = arith.truncf %336 : vector<2x32xf32> to vector<2x32xbf16>
    %cst_64 = arith.constant dense<0.000000e+00> : vector<2x128xf32>
    %343 = tpu.matmul %342, %92, %cst_64 {dimension_numbers = #tpu.dot_dimension_numbers<[1], [0], [0], [1], [0, 0, 1, 1], [], []>} : vector<2x32xbf16>, vector<32x128xbf16>, vector<2x128xf32> -> vector<2x128xf32>
    %344 = arith.addf %338, %343 : vector<2x128xf32>
    %345 = vector.extract_strided_slice %341 {offsets = [0, 0], sizes = [2, 96], strides = [1, 1]} : vector<2x128xf32> to vector<2x96xf32>
    %346 = arith.negf %345 : vector<2x96xf32>
    %347 = math.exp %346 : vector<2x96xf32>
    %cst_65 = arith.constant 1.000000e+00 : f32
    %348 = vector.broadcast %cst_65 : f32 to vector<2x96xf32>
    %349 = arith.addf %348, %347 : vector<2x96xf32>
    %350 = arith.divf %348, %349 : vector<2x96xf32>
    %351 = vector.extract_strided_slice %341 {offsets = [0, 96], sizes = [2, 32], strides = [1, 1]} : vector<2x128xf32> to vector<2x32xf32>
    %352 = math.tanh %351 : vector<2x32xf32>
    %353 = vector.extract_strided_slice %350 {offsets = [0, 0], sizes = [2, 32], strides = [1, 1]} : vector<2x96xf32> to vector<2x32xf32>
    %354 = vector.extract_strided_slice %350 {offsets = [0, 32], sizes = [2, 32], strides = [1, 1]} : vector<2x96xf32> to vector<2x32xf32>
    %355 = vector.extract_strided_slice %350 {offsets = [0, 64], sizes = [2, 32], strides = [1, 1]} : vector<2x96xf32> to vector<2x32xf32>
    %356 = arith.mulf %354, %318 : vector<2x32xf32>
    %357 = arith.mulf %353, %352 : vector<2x32xf32>
    %358 = arith.addf %356, %357 : vector<2x32xf32>
    %359 = math.tanh %358 : vector<2x32xf32>
    %360 = arith.mulf %355, %359 : vector<2x32xf32>
    %361 = vector.extract_strided_slice %344 {offsets = [0, 0], sizes = [2, 96], strides = [1, 1]} : vector<2x128xf32> to vector<2x96xf32>
    %362 = arith.negf %361 : vector<2x96xf32>
    %363 = math.exp %362 : vector<2x96xf32>
    %cst_66 = arith.constant 1.000000e+00 : f32
    %364 = vector.broadcast %cst_66 : f32 to vector<2x96xf32>
    %365 = arith.addf %364, %363 : vector<2x96xf32>
    %366 = arith.divf %364, %365 : vector<2x96xf32>
    %367 = vector.extract_strided_slice %344 {offsets = [0, 96], sizes = [2, 32], strides = [1, 1]} : vector<2x128xf32> to vector<2x32xf32>
    %368 = math.tanh %367 : vector<2x32xf32>
    %369 = vector.extract_strided_slice %366 {offsets = [0, 0], sizes = [2, 32], strides = [1, 1]} : vector<2x96xf32> to vector<2x32xf32>
    %370 = vector.extract_strided_slice %366 {offsets = [0, 32], sizes = [2, 32], strides = [1, 1]} : vector<2x96xf32> to vector<2x32xf32>
    %371 = vector.extract_strided_slice %366 {offsets = [0, 64], sizes = [2, 32], strides = [1, 1]} : vector<2x96xf32> to vector<2x32xf32>
    %372 = arith.mulf %370, %334 : vector<2x32xf32>
    %373 = arith.mulf %369, %368 : vector<2x32xf32>
    %374 = arith.addf %372, %373 : vector<2x32xf32>
    %375 = math.tanh %374 : vector<2x32xf32>
    %376 = arith.mulf %371, %375 : vector<2x32xf32>
    %377 = vector.extract_strided_slice %90 {offsets = [14, 0], sizes = [2, 128], strides = [1, 1]} : vector<16x256xf32> to vector<2x128xf32>
    %378 = vector.extract_strided_slice %90 {offsets = [0, 128], sizes = [2, 128], strides = [1, 1]} : vector<16x256xf32> to vector<2x128xf32>
    %379 = arith.truncf %360 : vector<2x32xf32> to vector<2x32xbf16>
    %cst_67 = arith.constant dense<0.000000e+00> : vector<2x128xf32>
    %380 = tpu.matmul %379, %91, %cst_67 {dimension_numbers = #tpu.dot_dimension_numbers<[1], [0], [0], [1], [0, 0, 1, 1], [], []>} : vector<2x32xbf16>, vector<32x128xbf16>, vector<2x128xf32> -> vector<2x128xf32>
    %381 = arith.addf %377, %380 : vector<2x128xf32>
    %382 = arith.truncf %376 : vector<2x32xf32> to vector<2x32xbf16>
    %cst_68 = arith.constant dense<0.000000e+00> : vector<2x128xf32>
    %383 = tpu.matmul %382, %92, %cst_68 {dimension_numbers = #tpu.dot_dimension_numbers<[1], [0], [0], [1], [0, 0, 1, 1], [], []>} : vector<2x32xbf16>, vector<32x128xbf16>, vector<2x128xf32> -> vector<2x128xf32>
    %384 = arith.addf %378, %383 : vector<2x128xf32>
    %385 = vector.extract_strided_slice %381 {offsets = [0, 0], sizes = [2, 96], strides = [1, 1]} : vector<2x128xf32> to vector<2x96xf32>
    %386 = arith.negf %385 : vector<2x96xf32>
    %387 = math.exp %386 : vector<2x96xf32>
    %cst_69 = arith.constant 1.000000e+00 : f32
    %388 = vector.broadcast %cst_69 : f32 to vector<2x96xf32>
    %389 = arith.addf %388, %387 : vector<2x96xf32>
    %390 = arith.divf %388, %389 : vector<2x96xf32>
    %391 = vector.extract_strided_slice %381 {offsets = [0, 96], sizes = [2, 32], strides = [1, 1]} : vector<2x128xf32> to vector<2x32xf32>
    %392 = math.tanh %391 : vector<2x32xf32>
    %393 = vector.extract_strided_slice %390 {offsets = [0, 0], sizes = [2, 32], strides = [1, 1]} : vector<2x96xf32> to vector<2x32xf32>
    %394 = vector.extract_strided_slice %390 {offsets = [0, 32], sizes = [2, 32], strides = [1, 1]} : vector<2x96xf32> to vector<2x32xf32>
    %395 = vector.extract_strided_slice %390 {offsets = [0, 64], sizes = [2, 32], strides = [1, 1]} : vector<2x96xf32> to vector<2x32xf32>
    %396 = arith.mulf %394, %358 : vector<2x32xf32>
    %397 = arith.mulf %393, %392 : vector<2x32xf32>
    %398 = arith.addf %396, %397 : vector<2x32xf32>
    %399 = math.tanh %398 : vector<2x32xf32>
    %400 = arith.mulf %395, %399 : vector<2x32xf32>
    %401 = vector.extract_strided_slice %384 {offsets = [0, 0], sizes = [2, 96], strides = [1, 1]} : vector<2x128xf32> to vector<2x96xf32>
    %402 = arith.negf %401 : vector<2x96xf32>
    %403 = math.exp %402 : vector<2x96xf32>
    %cst_70 = arith.constant 1.000000e+00 : f32
    %404 = vector.broadcast %cst_70 : f32 to vector<2x96xf32>
    %405 = arith.addf %404, %403 : vector<2x96xf32>
    %406 = arith.divf %404, %405 : vector<2x96xf32>
    %407 = vector.extract_strided_slice %384 {offsets = [0, 96], sizes = [2, 32], strides = [1, 1]} : vector<2x128xf32> to vector<2x32xf32>
    %408 = math.tanh %407 : vector<2x32xf32>
    %409 = vector.extract_strided_slice %406 {offsets = [0, 0], sizes = [2, 32], strides = [1, 1]} : vector<2x96xf32> to vector<2x32xf32>
    %410 = vector.extract_strided_slice %406 {offsets = [0, 32], sizes = [2, 32], strides = [1, 1]} : vector<2x96xf32> to vector<2x32xf32>
    %411 = vector.extract_strided_slice %406 {offsets = [0, 64], sizes = [2, 32], strides = [1, 1]} : vector<2x96xf32> to vector<2x32xf32>
    %412 = arith.mulf %410, %374 : vector<2x32xf32>
    %413 = arith.mulf %409, %408 : vector<2x32xf32>
    %414 = arith.addf %412, %413 : vector<2x32xf32>
    %415 = math.tanh %414 : vector<2x32xf32>
    %416 = arith.mulf %411, %415 : vector<2x32xf32>
    %417 = vector.extract_strided_slice %400 {offsets = [0, 0], sizes = [1, 32], strides = [1, 1]} : vector<2x32xf32> to vector<1x32xf32>
    %418 = vector.extract_strided_slice %400 {offsets = [1, 0], sizes = [1, 32], strides = [1, 1]} : vector<2x32xf32> to vector<1x32xf32>
    %419 = vector.extract_strided_slice %416 {offsets = [0, 0], sizes = [1, 32], strides = [1, 1]} : vector<2x32xf32> to vector<1x32xf32>
    %420 = vector.extract_strided_slice %416 {offsets = [1, 0], sizes = [1, 32], strides = [1, 1]} : vector<2x32xf32> to vector<1x32xf32>
    %421 = tpu.concatenate %417, %418 in 1 : vector<1x32xf32>, vector<1x32xf32> -> vector<1x64xf32>
    %422 = tpu.concatenate %419, %420 in 1 : vector<1x32xf32>, vector<1x32xf32> -> vector<1x64xf32>
    %423 = tpu.concatenate %421, %422 in 0 : vector<1x64xf32>, vector<1x64xf32> -> vector<2x64xf32>
    %424 = tpu.concatenate %120, %416 in 1 : vector<2x32xf32>, vector<2x32xf32> -> vector<2x64xf32>
    %425 = tpu.concatenate %160, %376 in 1 : vector<2x32xf32>, vector<2x32xf32> -> vector<2x64xf32>
    %426 = tpu.concatenate %200, %336 in 1 : vector<2x32xf32>, vector<2x32xf32> -> vector<2x64xf32>
    %427 = tpu.concatenate %240, %296 in 1 : vector<2x32xf32>, vector<2x32xf32> -> vector<2x64xf32>
    %428 = tpu.concatenate %280, %256 in 1 : vector<2x32xf32>, vector<2x32xf32> -> vector<2x64xf32>
    %429 = tpu.concatenate %320, %216 in 1 : vector<2x32xf32>, vector<2x32xf32> -> vector<2x64xf32>
    %430 = tpu.concatenate %360, %176 in 1 : vector<2x32xf32>, vector<2x32xf32> -> vector<2x64xf32>
    %431 = tpu.concatenate %400, %136 in 1 : vector<2x32xf32>, vector<2x32xf32> -> vector<2x64xf32>
    %432 = arith.mulf %424, %423 : vector<2x64xf32>
    %cst_71 = arith.constant dense<0.000000e+00> : vector<2xf32>
    %433 = vector.multi_reduction <add>, %432, %cst_71 [1] : vector<2x64xf32> to vector<2xf32>
    %434 = vector.shape_cast %433 : vector<2xf32> to vector<2x1xf32>
    %435 = arith.mulf %425, %423 : vector<2x64xf32>
    %cst_72 = arith.constant dense<0.000000e+00> : vector<2xf32>
    %436 = vector.multi_reduction <add>, %435, %cst_72 [1] : vector<2x64xf32> to vector<2xf32>
    %437 = vector.shape_cast %436 : vector<2xf32> to vector<2x1xf32>
    %438 = arith.mulf %426, %423 : vector<2x64xf32>
    %cst_73 = arith.constant dense<0.000000e+00> : vector<2xf32>
    %439 = vector.multi_reduction <add>, %438, %cst_73 [1] : vector<2x64xf32> to vector<2xf32>
    %440 = vector.shape_cast %439 : vector<2xf32> to vector<2x1xf32>
    %441 = arith.mulf %427, %423 : vector<2x64xf32>
    %cst_74 = arith.constant dense<0.000000e+00> : vector<2xf32>
    %442 = vector.multi_reduction <add>, %441, %cst_74 [1] : vector<2x64xf32> to vector<2xf32>
    %443 = vector.shape_cast %442 : vector<2xf32> to vector<2x1xf32>
    %444 = arith.mulf %428, %423 : vector<2x64xf32>
    %cst_75 = arith.constant dense<0.000000e+00> : vector<2xf32>
    %445 = vector.multi_reduction <add>, %444, %cst_75 [1] : vector<2x64xf32> to vector<2xf32>
    %446 = vector.shape_cast %445 : vector<2xf32> to vector<2x1xf32>
    %447 = arith.mulf %429, %423 : vector<2x64xf32>
    %cst_76 = arith.constant dense<0.000000e+00> : vector<2xf32>
    %448 = vector.multi_reduction <add>, %447, %cst_76 [1] : vector<2x64xf32> to vector<2xf32>
    %449 = vector.shape_cast %448 : vector<2xf32> to vector<2x1xf32>
    %450 = arith.mulf %430, %423 : vector<2x64xf32>
    %cst_77 = arith.constant dense<0.000000e+00> : vector<2xf32>
    %451 = vector.multi_reduction <add>, %450, %cst_77 [1] : vector<2x64xf32> to vector<2xf32>
    %452 = vector.shape_cast %451 : vector<2xf32> to vector<2x1xf32>
    %453 = arith.mulf %431, %423 : vector<2x64xf32>
    %cst_78 = arith.constant dense<0.000000e+00> : vector<2xf32>
    %454 = vector.multi_reduction <add>, %453, %cst_78 [1] : vector<2x64xf32> to vector<2xf32>
    %455 = vector.shape_cast %454 : vector<2xf32> to vector<2x1xf32>
    %456 = tpu.concatenate %434, %437, %440, %443, %446, %449, %452, %455 in 1 : vector<2x1xf32>, vector<2x1xf32>, vector<2x1xf32>, vector<2x1xf32>, vector<2x1xf32>, vector<2x1xf32>, vector<2x1xf32>, vector<2x1xf32> -> vector<2x8xf32>
    %cst_79 = arith.constant dense<0xFF800000> : vector<2xf32>
    %457 = vector.multi_reduction <maximumf>, %456, %cst_79 [1] : vector<2x8xf32> to vector<2xf32>
    %458 = vector.shape_cast %457 : vector<2xf32> to vector<2x1xf32>
    %459 = vector.broadcast %458 : vector<2x1xf32> to vector<2x8xf32>
    %460 = arith.subf %456, %459 : vector<2x8xf32>
    %461 = math.exp %460 : vector<2x8xf32>
    %cst_80 = arith.constant dense<0.000000e+00> : vector<2xf32>
    %462 = vector.multi_reduction <add>, %461, %cst_80 [1] : vector<2x8xf32> to vector<2xf32>
    %463 = vector.shape_cast %462 : vector<2xf32> to vector<2x1xf32>
    %464 = tpu.reciprocal %463 {approx = true} : vector<2x1xf32> -> vector<2x1xf32>
    %465 = vector.broadcast %464 : vector<2x1xf32> to vector<2x8xf32>
    %466 = arith.mulf %461, %465 : vector<2x8xf32>
    %467 = vector.extract_strided_slice %466 {offsets = [0, 0], sizes = [2, 1], strides = [1, 1]} : vector<2x8xf32> to vector<2x1xf32>
    %468 = vector.broadcast %467 : vector<2x1xf32> to vector<2x64xf32>
    %469 = arith.mulf %424, %468 : vector<2x64xf32>
    %470 = vector.extract_strided_slice %466 {offsets = [0, 1], sizes = [2, 1], strides = [1, 1]} : vector<2x8xf32> to vector<2x1xf32>
    %471 = vector.broadcast %470 : vector<2x1xf32> to vector<2x64xf32>
    %472 = arith.mulf %425, %471 : vector<2x64xf32>
    %473 = arith.addf %469, %472 : vector<2x64xf32>
    %474 = vector.extract_strided_slice %466 {offsets = [0, 2], sizes = [2, 1], strides = [1, 1]} : vector<2x8xf32> to vector<2x1xf32>
    %475 = vector.broadcast %474 : vector<2x1xf32> to vector<2x64xf32>
    %476 = arith.mulf %426, %475 : vector<2x64xf32>
    %477 = arith.addf %473, %476 : vector<2x64xf32>
    %478 = vector.extract_strided_slice %466 {offsets = [0, 3], sizes = [2, 1], strides = [1, 1]} : vector<2x8xf32> to vector<2x1xf32>
    %479 = vector.broadcast %478 : vector<2x1xf32> to vector<2x64xf32>
    %480 = arith.mulf %427, %479 : vector<2x64xf32>
    %481 = arith.addf %477, %480 : vector<2x64xf32>
    %482 = vector.extract_strided_slice %466 {offsets = [0, 4], sizes = [2, 1], strides = [1, 1]} : vector<2x8xf32> to vector<2x1xf32>
    %483 = vector.broadcast %482 : vector<2x1xf32> to vector<2x64xf32>
    %484 = arith.mulf %428, %483 : vector<2x64xf32>
    %485 = arith.addf %481, %484 : vector<2x64xf32>
    %486 = vector.extract_strided_slice %466 {offsets = [0, 5], sizes = [2, 1], strides = [1, 1]} : vector<2x8xf32> to vector<2x1xf32>
    %487 = vector.broadcast %486 : vector<2x1xf32> to vector<2x64xf32>
    %488 = arith.mulf %429, %487 : vector<2x64xf32>
    %489 = arith.addf %485, %488 : vector<2x64xf32>
    %490 = vector.extract_strided_slice %466 {offsets = [0, 6], sizes = [2, 1], strides = [1, 1]} : vector<2x8xf32> to vector<2x1xf32>
    %491 = vector.broadcast %490 : vector<2x1xf32> to vector<2x64xf32>
    %492 = arith.mulf %430, %491 : vector<2x64xf32>
    %493 = arith.addf %489, %492 : vector<2x64xf32>
    %494 = vector.extract_strided_slice %466 {offsets = [0, 7], sizes = [2, 1], strides = [1, 1]} : vector<2x8xf32> to vector<2x1xf32>
    %495 = vector.broadcast %494 : vector<2x1xf32> to vector<2x64xf32>
    %496 = arith.mulf %431, %495 : vector<2x64xf32>
    %497 = arith.addf %493, %496 : vector<2x64xf32>
    %498 = arith.truncf %497 : vector<2x64xf32> to vector<2x64xbf16>
    %c0_81 = arith.constant 0 : index
    %c0_82 = arith.constant 0 : index
    %499 = vector.load %arg7[%c0_81, %c0_82] : memref<64x2xbf16, #tpu.memory_space<vmem>>, vector<64x2xbf16>
    %cst_83 = arith.constant dense<0.000000e+00> : vector<2x2xf32>
    %500 = tpu.matmul %498, %499, %cst_83 {dimension_numbers = #tpu.dot_dimension_numbers<[1], [0], [0], [1], [0, 0, 1, 1], [], []>} : vector<2x64xbf16>, vector<64x2xbf16>, vector<2x2xf32> -> vector<2x2xf32>
    %c0_84 = arith.constant 0 : index
    %c0_85 = arith.constant 0 : index
    %501 = vector.load %arg8[%c0_84, %c0_85] : memref<1x2xf32, #tpu.memory_space<vmem>>, vector<1x2xf32>
    %502 = vector.broadcast %501 : vector<1x2xf32> to vector<2x2xf32>
    %503 = arith.addf %500, %502 : vector<2x2xf32>
    %c0_86 = arith.constant 0 : index
    %c0_87 = arith.constant 0 : index
    %504 = vector.load %arg9[%c0_86, %c0_87] : memref<2x2xf32, #tpu.memory_space<vmem>>, vector<2x2xf32>
    tpu.vector_store %arg9[%c0_86, %c0_87], %503 {strides = array<i32>} : memref<2x2xf32, #tpu.memory_space<vmem>>, vector<2x2xf32>,
    %c0_88 = arith.constant 0 : index
    %c0_89 = arith.constant 0 : index
    %505 = vector.load %arg10[%c0_88, %c0_89] : memref<2x8xf32, #tpu.memory_space<vmem>>, vector<2x8xf32>
    tpu.vector_store %arg10[%c0_88, %c0_89], %466 {strides = array<i32>} : memref<2x8xf32, #tpu.memory_space<vmem>>, vector<2x8xf32>,
    return
  }
  func.func @transform_0(%arg0: i32, %arg1: memref<2x8xi32, #tpu.memory_space<smem>>) -> (i32, i32) {
    %c0_i32 = arith.constant 0 : i32
    %c0_i32_0 = arith.constant 0 : i32
    %c0_i32_1 = arith.constant 0 : i32
    return %c0_i32, %c0_i32_0 : i32, i32
  }
  func.func @transform_1(%arg0: i32, %arg1: memref<2x8xi32, #tpu.memory_space<smem>>) -> (i32, i32) {
    %c0_i32 = arith.constant 0 : i32
    %c0_i32_0 = arith.constant 0 : i32
    %c0_i32_1 = arith.constant 0 : i32
    return %c0_i32, %c0_i32_0 : i32, i32
  }
  func.func @transform_2(%arg0: i32, %arg1: memref<2x8xi32, #tpu.memory_space<smem>>) -> (i32, i32) {
    %c0_i32 = arith.constant 0 : i32
    %c0_i32_0 = arith.constant 0 : i32
    %c0_i32_1 = arith.constant 0 : i32
    return %c0_i32, %c0_i32_0 : i32, i32
  }
  func.func @transform_3(%arg0: i32, %arg1: memref<2x8xi32, #tpu.memory_space<smem>>) -> (i32, i32) {
    %c0_i32 = arith.constant 0 : i32
    %c0_i32_0 = arith.constant 0 : i32
    %c0_i32_1 = arith.constant 0 : i32
    return %c0_i32, %c0_i32_0 : i32, i32
  }
  func.func @transform_4(%arg0: i32, %arg1: memref<2x8xi32, #tpu.memory_space<smem>>) -> (i32, i32) {
    %c0_i32 = arith.constant 0 : i32
    %c0_i32_0 = arith.constant 0 : i32
    %c0_i32_1 = arith.constant 0 : i32
    return %c0_i32, %c0_i32_0 : i32, i32
  }
  func.func @transform_5(%arg0: i32, %arg1: memref<2x8xi32, #tpu.memory_space<smem>>) -> (i32, i32) {
    %c0_i32 = arith.constant 0 : i32
    %c0_i32_0 = arith.constant 0 : i32
    %c0_i32_1 = arith.constant 0 : i32
    return %c0_i32, %c0_i32_0 : i32, i32
  }
  func.func @transform_6(%arg0: i32, %arg1: memref<2x8xi32, #tpu.memory_space<smem>>) -> (i32, i32) {
    %c0_i32 = arith.constant 0 : i32
    %c0_i32_0 = arith.constant 0 : i32
    %c0_i32_1 = arith.constant 0 : i32
    return %c0_i32, %c0_i32_0 : i32, i32
  }
  func.func @transform_7(%arg0: i32, %arg1: memref<2x8xi32, #tpu.memory_space<smem>>) -> (i32, i32) {
    %c0_i32 = arith.constant 0 : i32
    %c0_i32_0 = arith.constant 0 : i32
    %c0_i32_1 = arith.constant 0 : i32
    return %c0_i32, %c0_i32_0 : i32, i32
  }
  func.func @transform_8(%arg0: i32, %arg1: memref<2x8xi32, #tpu.memory_space<smem>>) -> (i32, i32) {
    %c0_i32 = arith.constant 0 : i32
    %c0_i32_0 = arith.constant 0 : i32
    %c0_i32_1 = arith.constant 0 : i32
    return %c0_i32, %c0_i32_0 : i32, i32
  }
}

</mosaic_0001>

<llo_original>
// kernel: bilstm_attention_forward.1
$region0: #{bilstm_attention_forward.1}
  #allocation0 [shape = 'u32[]', space=smem, size = 0x4, offset = 0x4, fixed_abs, tag = 'smem constant byte address 0x4 - core index']
  #allocation1 [shape = 'u32[144,128]{1,0:T(1,128)}', space=vmem, size = 0x12000, scoped, tag = 'internal scratch']
  #allocation2 [shape = 's32[1]{0}', space=sflag, size = 0x4, scoped, tag = 'scoped memory for bilstm_attention_forward.1']
  #allocation3 [shape = 'u8[1024]{0}', space=smem, size = 0x400, scoped, tag = 'prefetched SMEM operand 0']
  %s0 = inlined_call_operand.hbm [shape: s32[2,8], index: 0, kind: input, shape index: {}]
  %s1 = inlined_call_operand.hbm [shape: bf16[16,16], index: 1, kind: input, shape index: {}]
  %s2 = inlined_call_operand.vmem [shape: bf16[16,256], index: 2, kind: input, shape index: {}]
  %s3 = inlined_call_operand.hbm [shape: f32[1,256], index: 3, kind: input, shape index: {}]
  %s4 = inlined_call_operand.vmem [shape: bf16[32,128], index: 4, kind: input, shape index: {}]
  %s5 = inlined_call_operand.vmem [shape: bf16[32,128], index: 5, kind: input, shape index: {}]
  %s6 = inlined_call_operand.vmem [shape: bf16[64,2], index: 6, kind: input, shape index: {}]
  %s7 = inlined_call_operand.hbm [shape: f32[1,2], index: 7, kind: input, shape index: {}]
  %s8 = inlined_call_operand.hbm [shape: f32[2,2], index: 8, kind: output, shape index: {0}]
  %s9 = inlined_call_operand.hbm [shape: f32[2,8], index: 9, kind: output, shape index: {1}]
  %10 = xla_tuple %s8, %s9
  %s11 = sld [smem:[#allocation0]]
  $region58: #{bilstm_attention_forward.1} parent=0
    _
  %s13 = ssub.s32 1, %s11
  %s14 = scalar_select 0, %s13, %s11
  %16 = dma.hbm_to_smem %s0, 32, [#allocation3], [#allocation2]
  %17 = dma.done [#allocation2], 32
  %18 = sfence
  $region1: #{bilstm_attention_forward.1} parent=0
    #allocation4 [shape = 'u8[4096]{0}', space=vmem, size = 0x1000, scoped, tag = 'input window, operand 1, single buffered']
    #allocation5 [shape = 's32[1]{0}', space=sflag, size = 0x4, scoped, tag = 'scoped memory for bilstm_attention_forward.1']
    #allocation6 [shape = 's32[1]{0}', space=sflag, size = 0x4, scoped, tag = 'scoped memory for bilstm_attention_forward.1']
    #allocation7 [shape = 'u8[1024]{0}', space=vmem, size = 0x400, scoped, tag = 'input window, operand 3, single buffered']
    #allocation8 [shape = 's32[1]{0}', space=sflag, size = 0x4, scoped, tag = 'scoped memory for bilstm_attention_forward.1']
    #allocation9 [shape = 'u8[512]{0}', space=vmem, size = 0x400, scoped, tag = 'input window, operand 7, single buffered']
    #allocation10 [shape = 'u8[1024]{0}', space=vmem, size = 0x400, scoped, tag = 'output window, operand 0, single buffered']
    #allocation11 [shape = 'u8[1024]{0}', space=vmem, size = 0x400, scoped, tag = 'output window, operand 1, single buffered']
    #allocation12 [shape = 's32[1]{0}', space=sflag, size = 0x4, scoped, tag = 'scoped memory for bilstm_attention_forward.1']
    %19 = vsyncpa [#allocation5], 0
    %20 = vsyncpa [#allocation8], 0
    %21 = vsyncpa [#allocation6], 0
    %22 = vsyncpa [#allocation12], 0
    // Predicated region
    $region2: #{bilstm_attention_forward.1} parent=1 // pred_check
      _
    $region3: #{bilstm_attention_forward.1} parent=1 // pred_check_branch
      %24 = sbr.rel (0) target = $region5
    $region4: #{bilstm_attention_forward.1} parent=1 // pred_region
      %s26 = ssub.s32 128, 128
      %27 = vsyncadd [#allocation5], %s26
      %s28 = sshll.u32 [#allocation4], 4
      %s29 = int_to_ptr.vmem [resolvable:$true] %s28
      %34 = dma.hbm_to_vmem [thread:$0]  %s1, 128, %s29, [#allocation5], 64, 64, 4
    $region5: #{bilstm_attention_forward.1} parent=1 // pred_fallthru
      _
    // Predicated region
    $region6: #{bilstm_attention_forward.1} parent=1 // pred_check
      _
    $region7: #{bilstm_attention_forward.1} parent=1 // pred_check_branch
      %36 = sbr.rel (0) target = $region9
    $region8: #{bilstm_attention_forward.1} parent=1 // pred_region
      _
    $region9: #{bilstm_attention_forward.1} parent=1 // pred_fallthru
      _
    // Predicated region
    $region10: #{bilstm_attention_forward.1} parent=1 // pred_check
      _
    $region11: #{bilstm_attention_forward.1} parent=1 // pred_check_branch
      %38 = sbr.rel (0) target = $region13
    $region12: #{bilstm_attention_forward.1} parent=1 // pred_region
      %s40 = ssub.s32 32, 32
      %41 = vsyncadd [#allocation8], %s40
      %s43 = sshll.u32 [#allocation7], 4
      %s44 = int_to_ptr.vmem [resolvable:$true] %s43
      %46 = dma.hbm_to_vmem [thread:$0]  %s3, 32, %s44, [#allocation8]
    $region13: #{bilstm_attention_forward.1} parent=1 // pred_fallthru
      _
    // Predicated region
    $region14: #{bilstm_attention_forward.1} parent=1 // pred_check
      _
    $region15: #{bilstm_attention_forward.1} parent=1 // pred_check_branch
      %48 = sbr.rel (0) target = $region17
    $region16: #{bilstm_attention_forward.1} parent=1 // pred_region
      _
    $region17: #{bilstm_attention_forward.1} parent=1 // pred_fallthru
      _
    // Predicated region
    $region18: #{bilstm_attention_forward.1} parent=1 // pred_check
      _
    $region19: #{bilstm_attention_forward.1} parent=1 // pred_check_branch
      %50 = sbr.rel (0) target = $region21
    $region20: #{bilstm_attention_forward.1} parent=1 // pred_region
      _
    $region21: #{bilstm_attention_forward.1} parent=1 // pred_fallthru
      _
    // Predicated region
    $region22: #{bilstm_attention_forward.1} parent=1 // pred_check
      _
    $region23: #{bilstm_attention_forward.1} parent=1 // pred_check_branch
      %52 = sbr.rel (0) target = $region25
    $region24: #{bilstm_attention_forward.1} parent=1 // pred_region
      _
    $region25: #{bilstm_attention_forward.1} parent=1 // pred_fallthru
      _
    // Predicated region
    $region26: #{bilstm_attention_forward.1} parent=1 // pred_check
      _
    $region27: #{bilstm_attention_forward.1} parent=1 // pred_check_branch
      %54 = sbr.rel (0) target = $region29
    $region28: #{bilstm_attention_forward.1} parent=1 // pred_region
      %s56 = ssub.s32 16, 16
      %57 = vsyncadd [#allocation8], %s56
      %s59 = sshll.u32 [#allocation9], 4
      %s60 = int_to_ptr.vmem [resolvable:$true] %s59
      %62 = dma.hbm_to_vmem [thread:$0]  %s7, 16, %s60, [#allocation8]
    $region29: #{bilstm_attention_forward.1} parent=1 // pred_fallthru
      _
    // Predicated region
    $region30: #{bilstm_attention_forward.1} parent=1 // pred_check
      _
    $region31: #{bilstm_attention_forward.1} parent=1 // pred_check_branch
      %64 = sbr.rel (0) target = $region33
    $region32: #{bilstm_attention_forward.1} parent=1 // pred_region
      %65 = dma.done [#allocation5], 128
    $region33: #{bilstm_attention_forward.1} parent=1 // pred_fallthru
      _
    // Predicated region
    $region34: #{bilstm_attention_forward.1} parent=1 // pred_check
      _
    $region35: #{bilstm_attention_forward.1} parent=1 // pred_check_branch
      %67 = sbr.rel (0) target = $region37
    $region36: #{bilstm_attention_forward.1} parent=1 // pred_region
      %68 = dma.done [#allocation8], 32
    $region37: #{bilstm_attention_forward.1} parent=1 // pred_fallthru
      _
    // Predicated region
    $region38: #{bilstm_attention_forward.1} parent=1 // pred_check
      _
    $region39: #{bilstm_attention_forward.1} parent=1 // pred_check_branch
      %70 = sbr.rel (0) target = $region41
    $region40: #{bilstm_attention_forward.1} parent=1 // pred_region
      %71 = dma.done [#allocation8], 16
    $region41: #{bilstm_attention_forward.1} parent=1 // pred_fallthru
      _
    %v73 = vlaneseq
    %v74 = vand.u32 %v73, 127
    %s75 = sld [smem:[#allocation3]]
    %v76 = vstv %s75
    %vm77 = vcmp.eq.s32.totalorder %v74, %v76
    %v78 = vsel %vm77, 1, 0
    %v79 = vcvt.s32.f32 %v78
    %s80 = sld [smem:[#allocation3 + $0x80]]
    %v81 = vstv %s80
    %vm82 = vcmp.eq.s32.totalorder %v74, %v81
    %v83 = vsel %vm82, 1, 0
    %v84 = vcvt.s32.f32 %v83
    %s85 = sld [smem:[#allocation3 + $0x1]]
    %v86 = vstv %s85
    %vm87 = vcmp.eq.s32.totalorder %v74, %v86
    %v88 = vsel %vm87, 1, 0
    %v89 = vcvt.s32.f32 %v88
    %s90 = sld [smem:[#allocation3 + $0x81]]
    %v91 = vstv %s90
    %vm92 = vcmp.eq.s32.totalorder %v74, %v91
    %v93 = vsel %vm92, 1, 0
    %v94 = vcvt.s32.f32 %v93
    %s95 = sld [smem:[#allocation3 + $0x2]]
    %v96 = vstv %s95
    %vm97 = vcmp.eq.s32.totalorder %v74, %v96
    %v98 = vsel %vm97, 1, 0
    %v99 = vcvt.s32.f32 %v98
    %s100 = sld [smem:[#allocation3 + $0x82]]
    %v101 = vstv %s100
    %vm102 = vcmp.eq.s32.totalorder %v74, %v101
    %v103 = vsel %vm102, 1, 0
    %v104 = vcvt.s32.f32 %v103
    %s105 = sld [smem:[#allocation3 + $0x3]]
    %v106 = vstv %s105
    %vm107 = vcmp.eq.s32.totalorder %v74, %v106
    %v108 = vsel %vm107, 1, 0
    %v109 = vcvt.s32.f32 %v108
    %s110 = sld [smem:[#allocation3 + $0x83]]
    %v111 = vstv %s110
    %vm112 = vcmp.eq.s32.totalorder %v74, %v111
    %v113 = vsel %vm112, 1, 0
    %v114 = vcvt.s32.f32 %v113
    %s115 = sld [smem:[#allocation3 + $0x4]]
    %v116 = vstv %s115
    %vm117 = vcmp.eq.s32.totalorder %v74, %v116
    %v118 = vsel %vm117, 1, 0
    %v119 = vcvt.s32.f32 %v118
    %s120 = sld [smem:[#allocation3 + $0x84]]
    %v121 = vstv %s120
    %vm122 = vcmp.eq.s32.totalorder %v74, %v121
    %v123 = vsel %vm122, 1, 0
    %v124 = vcvt.s32.f32 %v123
    %s125 = sld [smem:[#allocation3 + $0x5]]
    %v126 = vstv %s125
    %vm127 = vcmp.eq.s32.totalorder %v74, %v126
    %v128 = vsel %vm127, 1, 0
    %v129 = vcvt.s32.f32 %v128
    %s130 = sld [smem:[#allocation3 + $0x85]]
    %v131 = vstv %s130
    %vm132 = vcmp.eq.s32.totalorder %v74, %v131
    %v133 = vsel %vm132, 1, 0
    %v134 = vcvt.s32.f32 %v133
    %s135 = sld [smem:[#allocation3 + $0x6]]
    %v136 = vstv %s135
    %vm137 = vcmp.eq.s32.totalorder %v74, %v136
    %v138 = vsel %vm137, 1, 0
    %v139 = vcvt.s32.f32 %v138
    %s140 = sld [smem:[#allocation3 + $0x86]]
    %v141 = vstv %s140
    %vm142 = vcmp.eq.s32.totalorder %v74, %v141
    %v143 = vsel %vm142, 1, 0
    %v144 = vcvt.s32.f32 %v143
    %s145 = sld [smem:[#allocation3 + $0x7]]
    %v146 = vstv %s145
    %vm147 = vcmp.eq.s32.totalorder %v74, %v146
    %v148 = vsel %vm147, 1, 0
    %v149 = vcvt.s32.f32 %v148
    %s150 = sld [smem:[#allocation3 + $0x87]]
    %v151 = vstv %s150
    %vm152 = vcmp.eq.s32.totalorder %v74, %v151
    %v153 = vsel %vm152, 1, 0
    %v154 = vcvt.s32.f32 %v153
    %vm155 = vcmask 1040384
    %v156 = vsel %vm155, %v79, %v84
    %vm157 = vcmask 1041408
    %v158 = vsel %vm157, %v156, %v89
    %vm159 = vcmask 1042432
    %v160 = vsel %vm159, %v158, %v94
    %vm161 = vcmask 1043456
    %v162 = vsel %vm161, %v160, %v99
    %vm163 = vcmask 1044480
    %v164 = vsel %vm163, %v162, %v104
    %vm165 = vcmask 1045504
    %v166 = vsel %vm165, %v164, %v109
    %vm167 = vcmask 1046528
    %v168 = vsel %vm167, %v166, %v114
    %v169 = vsel %vm155, %v119, %v124
    %v170 = vsel %vm157, %v169, %v129
    %v171 = vsel %vm159, %v170, %v134
    %v172 = vsel %vm161, %v171, %v139
    %v173 = vsel %vm163, %v172, %v144
    %v174 = vsel %vm165, %v173, %v149
    %v175 = vsel %vm167, %v174, %v154
    %v176 = vpack.c.bf16 %v175, %v168
    %v177 = vld [vmem:[#allocation4] sm:$0xf]
    %v178 = vld [vmem:[#allocation4 + $0x4] sm:$0xf]
    %v181 = vunpack.c.l.b16 %v177
    %v182 = vunpack.c.l.b16 %v178
    %v183 = vpack.c.b16 %v182, %v181
    %vm185 = vcmask 130048
    %v187 = vsel %vm185, %v176, 0
    %189 = vmatprep.subr.bf16.mxu0 0
    %190 = vmatpush1.bf16.msra.mxu0 %v183
    %191 = vmatprep.subr.bf16.mxu0 0
    %192 = vmatpush1.bf16.msra.mxu0 0
    %193 = vmatprep.subr.bf16.mxu0 0
    %194 = vmatpush1.bf16.msra.mxu0 0
    %195 = vmatprep.subr.bf16.mxu0 0
    %196 = vmatpush1.bf16.msra.mxu0 0
    %197 = vmatprep.subr.bf16.mxu0 0
    %198 = vmatpush1.bf16.msra.mxu0 0
    %199 = vmatprep.subr.bf16.mxu0 0
    %200 = vmatpush1.bf16.msra.mxu0 0
    %201 = vmatprep.subr.bf16.mxu0 0
    %202 = vmatpush1.bf16.msra.mxu0 0
    %203 = vmatprep.subr.bf16.mxu0 0
    %204 = vmatpush1.bf16.msra.mxu0 0
    %205 = vmatprep.subr.bf16.mxu0 0
    %206 = vmatpush1.bf16.msra.mxu0 0
    %207 = vmatprep.subr.bf16.mxu0 0
    %208 = vmatpush1.bf16.msra.mxu0 0
    %209 = vmatprep.subr.bf16.mxu0 0
    %210 = vmatpush1.bf16.msra.mxu0 0
    %211 = vmatprep.subr.bf16.mxu0 0
    %212 = vmatpush1.bf16.msra.mxu0 0
    %213 = vmatprep.subr.bf16.mxu0 0
    %214 = vmatpush1.bf16.msra.mxu0 0
    %215 = vmatprep.subr.bf16.mxu0 0
    %216 = vmatpush1.bf16.msra.mxu0 0
    %217 = vmatprep.subr.bf16.mxu0 0
    %218 = vmatpush1.bf16.msra.mxu0 0
    %219 = vmatprep.subr.bf16.mxu0 0
    %220 = vmatpush1.bf16.msra.mxu0 0
    %221 = vmatprep.mubr.bf16.mxu0 0
    %222 = vmatmul.mubr.bf16.gmra.mrb[0].mxu0 %v187
    %v223 = vpop.f32.mrb[0].mxu0
    %v224 = vadd.f32 0.0, %v223
    %v225 = vpop.f32.mrb[0].mxu0
    %v226 = vpop.f32.mrb[0].mxu0
    %v227 = vadd.f32 0.0, %v226
    %v228 = vpop.f32.mrb[0].mxu0
    %229 = vdwg.mxu0
    %v230 = vpack.c.bf16 %v227, %v224
    %v231 = vld [vmem:[%s2] sm:$0xff]
    %v232 = vld [vmem:[%s2 + $0x8] sm:$0xff]
    %v233 = vld [vmem:[#allocation7] sm:$0x3]
    %v235 = vlaneseq
    %v236 = vshrl.u32 %v235, 7
    %v237 = vsub.s32 0, %v236
    %v238 = vrot.slane %v233, %v237
    %v239 = vlaneseq
    %v240 = vshrl.u32 %v239, 7
    %v241 = vsub.s32 1, %v240
    %v242 = vrot.slane %v233, %v241
    %v247 = vunpack.c.l.b16 %v231
    %v248 = vunpack.c.h.b16 %v231
    %v249 = vunpack.c.l.b16 %v232
    %v250 = vunpack.c.h.b16 %v232
    %v251 = vpack.c.b16 %v249, %v247
    %v252 = vpack.c.b16 %v250, %v248
    %v256 = vsel %vm185, %v230, 0
    %258 = vmatprep.subr.bf16.mxu0 %v252
    %259 = vmatpush1.bf16.msra.mxu0 %v251
    %260 = vmatprep.subr.bf16.mxu0 0
    %261 = vmatpush1.bf16.msra.mxu0 0
    %262 = vmatprep.subr.bf16.mxu0 0
    %263 = vmatpush1.bf16.msra.mxu0 0
    %264 = vmatprep.subr.bf16.mxu0 0
    %265 = vmatpush1.bf16.msra.mxu0 0
    %266 = vmatprep.subr.bf16.mxu0 0
    %267 = vmatpush1.bf16.msra.mxu0 0
    %268 = vmatprep.subr.bf16.mxu0 0
    %269 = vmatpush1.bf16.msra.mxu0 0
    %270 = vmatprep.subr.bf16.mxu0 0
    %271 = vmatpush1.bf16.msra.mxu0 0
    %272 = vmatprep.subr.bf16.mxu0 0
    %273 = vmatpush1.bf16.msra.mxu0 0
    %274 = vmatprep.subr.bf16.mxu0 0
    %275 = vmatpush1.bf16.msra.mxu0 0
    %276 = vmatprep.subr.bf16.mxu0 0
    %277 = vmatpush1.bf16.msra.mxu0 0
    %278 = vmatprep.subr.bf16.mxu0 0
    %279 = vmatpush1.bf16.msra.mxu0 0
    %280 = vmatprep.subr.bf16.mxu0 0
    %281 = vmatpush1.bf16.msra.mxu0 0
    %282 = vmatprep.subr.bf16.mxu0 0
    %283 = vmatpush1.bf16.msra.mxu0 0
    %284 = vmatprep.subr.bf16.mxu0 0
    %285 = vmatpush1.bf16.msra.mxu0 0
    %286 = vmatprep.subr.bf16.mxu0 0
    %287 = vmatpush1.bf16.msra.mxu0 0
    %288 = vmatprep.subr.bf16.mxu0 0
    %289 = vmatpush1.bf16.msra.mxu0 0
    %290 = vmatprep.mubr.bf16.mxu0 0
    %291 = vmatmul.mubr.bf16.gmra.mrb[0].mxu0 %v256
    %v292 = vpop.f32.mrb[0].mxu0
    %v293 = vadd.f32 %v238, %v292
    %v294 = vpop.f32.mrb[0].mxu0
    %v295 = vadd.f32 %v242, %v294
    %v296 = vpop.f32.mrb[0].mxu0
    %v297 = vadd.f32 %v238, %v296
    %v298 = vpop.f32.mrb[0].mxu0
    %v299 = vadd.f32 %v242, %v298
    %300 = vdwg.mxu0
    %v301 = vld [vmem:[%s4] sm:$0xf]
    %v302 = vld [vmem:[%s4 + $0x4] sm:$0xf]
    %v303 = vld [vmem:[%s4 + $0x8] sm:$0xf]
    %v304 = vld [vmem:[%s4 + $0xc] sm:$0xf]
    %v305 = vld [vmem:[%s5] sm:$0xf]
    %v306 = vld [vmem:[%s5 + $0x4] sm:$0xf]
    %v307 = vld [vmem:[%s5 + $0x8] sm:$0xf]
    %v308 = vld [vmem:[%s5 + $0xc] sm:$0xf]
    %v313 = vunpack.c.l.b16 %v301
    %v314 = vunpack.c.l.b16 %v302
    %v315 = vunpack.c.l.b16 %v303
    %v316 = vunpack.c.l.b16 %v304
    %v317 = vpack.c.b16 %v314, %v313
    %v318 = vpack.c.b16 %v316, %v315
    %vm321 = vcmask 261120
    %v323 = vsel %vm321, 0, 0
    %325 = vmatprep.subr.bf16.mxu0 0
    %326 = vmatpush1.bf16.msra.mxu0 %v317
    %327 = vmatprep.subr.bf16.mxu0 0
    %328 = vmatpush1.bf16.msra.mxu0 %v318
    %329 = vmatprep.subr.bf16.mxu0 0
    %330 = vmatpush1.bf16.msra.mxu0 0
    %331 = vmatprep.subr.bf16.mxu0 0
    %332 = vmatpush1.bf16.msra.mxu0 0
    %333 = vmatprep.subr.bf16.mxu0 0
    %334 = vmatpush1.bf16.msra.mxu0 0
    %335 = vmatprep.subr.bf16.mxu0 0
    %336 = vmatpush1.bf16.msra.mxu0 0
    %337 = vmatprep.subr.bf16.mxu0 0
    %338 = vmatpush1.bf16.msra.mxu0 0
    %339 = vmatprep.subr.bf16.mxu0 0
    %340 = vmatpush1.bf16.msra.mxu0 0
    %341 = vmatprep.subr.bf16.mxu0 0
    %342 = vmatpush1.bf16.msra.mxu0 0
    %343 = vmatprep.subr.bf16.mxu0 0
    %344 = vmatpush1.bf16.msra.mxu0 0
    %345 = vmatprep.subr.bf16.mxu0 0
    %346 = vmatpush1.bf16.msra.mxu0 0
    %347 = vmatprep.subr.bf16.mxu0 0
    %348 = vmatpush1.bf16.msra.mxu0 0
    %349 = vmatprep.subr.bf16.mxu0 0
    %350 = vmatpush1.bf16.msra.mxu0 0
    %351 = vmatprep.subr.bf16.mxu0 0
    %352 = vmatpush1.bf16.msra.mxu0 0
    %353 = vmatprep.subr.bf16.mxu0 0
    %354 = vmatpush1.bf16.msra.mxu0 0
    %355 = vmatprep.subr.bf16.mxu0 0
    %356 = vmatpush1.bf16.msra.mxu0 0
    %357 = vmatprep.mubr.bf16.mxu0 0
    %358 = vmatmul.mubr.bf16.gmra.mrb[0].mxu0 %v323
    %v359 = vpop.f32.mrb[0].mxu0
    %v360 = vadd.f32 0.0, %v359
    %v361 = vpop.f32.mrb[0].mxu0
    %v362 = vpop.f32.mrb[0].mxu0
    %v363 = vpop.f32.mrb[0].mxu0
    %364 = vdwg.mxu0
    %v365 = vadd.f32 %v293, %v360
    %v370 = vunpack.c.l.b16 %v305
    %v371 = vunpack.c.l.b16 %v306
    %v372 = vunpack.c.l.b16 %v307
    %v373 = vunpack.c.l.b16 %v308
    %v374 = vpack.c.b16 %v371, %v370
    %v375 = vpack.c.b16 %v373, %v372
    %378 = vmatprep.subr.bf16.mxu0 0
    %379 = vmatpush1.bf16.msra.mxu0 %v374
    %380 = vmatprep.subr.bf16.mxu0 0
    %381 = vmatpush1.bf16.msra.mxu0 %v375
    %382 = vmatprep.subr.bf16.mxu0 0
    %383 = vmatpush1.bf16.msra.mxu0 0
    %384 = vmatprep.subr.bf16.mxu0 0
    %385 = vmatpush1.bf16.msra.mxu0 0
    %386 = vmatprep.subr.bf16.mxu0 0
    %387 = vmatpush1.bf16.msra.mxu0 0
    %388 = vmatprep.subr.bf16.mxu0 0
    %389 = vmatpush1.bf16.msra.mxu0 0
    %390 = vmatprep.subr.bf16.mxu0 0
    %391 = vmatpush1.bf16.msra.mxu0 0
    %392 = vmatprep.subr.bf16.mxu0 0
    %393 = vmatpush1.bf16.msra.mxu0 0
    %394 = vmatprep.subr.bf16.mxu0 0
    %395 = vmatpush1.bf16.msra.mxu0 0
    %396 = vmatprep.subr.bf16.mxu0 0
    %397 = vmatpush1.bf16.msra.mxu0 0
    %398 = vmatprep.subr.bf16.mxu0 0
    %399 = vmatpush1.bf16.msra.mxu0 0
    %400 = vmatprep.subr.bf16.mxu0 0
    %401 = vmatpush1.bf16.msra.mxu0 0
    %402 = vmatprep.subr.bf16.mxu0 0
    %403 = vmatpush1.bf16.msra.mxu0 0
    %404 = vmatprep.subr.bf16.mxu0 0
    %405 = vmatpush1.bf16.msra.mxu0 0
    %406 = vmatprep.subr.bf16.mxu0 0
    %407 = vmatpush1.bf16.msra.mxu0 0
    %408 = vmatprep.subr.bf16.mxu0 0
    %409 = vmatpush1.bf16.msra.mxu0 0
    %410 = vmatprep.mubr.bf16.mxu0 0
    %411 = vmatmul.mubr.bf16.gmra.mrb[0].mxu0 %v323
    %v412 = vpop.f32.mrb[0].mxu0
    %v413 = vadd.f32 0.0, %v412
    %v414 = vpop.f32.mrb[0].mxu0
    %v415 = vpop.f32.mrb[0].mxu0
    %v416 = vpop.f32.mrb[0].mxu0
    %417 = vdwg.mxu0
    %v419 = vrot.slane %v413, 2
    %v421 = vadd.f32 %v299, %v419
    %v422 = vxor.u32 %v365, 2147483648
    %v423 = vmul.f32 %v422, 1.442695
    %v424 = vpow.pop %v423
    %v425 = vadd.f32 %v424, 1.0
    %v426 = vrcp.pop %v425
    %v427 = vmul.f32 1.0, %v426
    %v428 = vtanh.pop %v365
    %v429 = vmul.f32 %v427, 0.0
    %431 = vrot.lane.b32.xlu0 %v428, 32
    %v432 = vpop.permute.xlu0 %431
    %v434 = vmul.f32 %v427, %v432
    %436 = vrot.lane.b32.xlu0 %v434, 32
    %v437 = vpop.permute.xlu0 %436
    %v439 = vadd.f32 %v429, %v437
    %v440 = vtanh.pop %v439
    %442 = vrot.lane.b32.xlu0 %v440, 32
    %v443 = vpop.permute.xlu0 %442
    %v445 = vmul.f32 %v427, %v443
    %v446 = vxor.u32 %v421, 2147483648
    %v447 = vmul.f32 %v446, 1.442695
    %v448 = vpow.pop %v447
    %v449 = vadd.f32 %v448, 1.0
    %v450 = vrcp.pop %v449
    %v451 = vmul.f32 1.0, %v450
    %v452 = vtanh.pop %v421
    %v453 = vmul.f32 %v451, 0.0
    %455 = vrot.lane.b32.xlu0 %v452, 32
    %v456 = vpop.permute.xlu0 %455
    %v458 = vmul.f32 %v451, %v456
    %460 = vrot.lane.b32.xlu0 %v458, 32
    %v461 = vpop.permute.xlu0 %460
    %v463 = vadd.f32 %v453, %v461
    %v464 = vtanh.pop %v463
    %466 = vrot.lane.b32.xlu0 %v464, 32
    %v467 = vpop.permute.xlu0 %466
    %v469 = vmul.f32 %v451, %v467
    %v470 = vpack.c.bf16 %v445, %v445
    %472 = vrot.lane.b32.xlu0 %v470, 64
    %v473 = vpop.permute.xlu0 %472
    %v475 = vsel %vm321, %v473, 0
    %477 = vmatprep.subr.bf16.mxu0 0
    %478 = vmatpush1.bf16.msra.mxu0 %v317
    %479 = vmatprep.subr.bf16.mxu0 0
    %480 = vmatpush1.bf16.msra.mxu0 %v318
    %481 = vmatprep.subr.bf16.mxu0 0
    %482 = vmatpush1.bf16.msra.mxu0 0
    %483 = vmatprep.subr.bf16.mxu0 0
    %484 = vmatpush1.bf16.msra.mxu0 0
    %485 = vmatprep.subr.bf16.mxu0 0
    %486 = vmatpush1.bf16.msra.mxu0 0
    %487 = vmatprep.subr.bf16.mxu0 0
    %488 = vmatpush1.bf16.msra.mxu0 0
    %489 = vmatprep.subr.bf16.mxu0 0
    %490 = vmatpush1.bf16.msra.mxu0 0
    %491 = vmatprep.subr.bf16.mxu0 0
    %492 = vmatpush1.bf16.msra.mxu0 0
    %493 = vmatprep.subr.bf16.mxu0 0
    %494 = vmatpush1.bf16.msra.mxu0 0
    %495 = vmatprep.subr.bf16.mxu0 0
    %496 = vmatpush1.bf16.msra.mxu0 0
    %497 = vmatprep.subr.bf16.mxu0 0
    %498 = vmatpush1.bf16.msra.mxu0 0
    %499 = vmatprep.subr.bf16.mxu0 0
    %500 = vmatpush1.bf16.msra.mxu0 0
    %501 = vmatprep.subr.bf16.mxu0 0
    %502 = vmatpush1.bf16.msra.mxu0 0
    %503 = vmatprep.subr.bf16.mxu0 0
    %504 = vmatpush1.bf16.msra.mxu0 0
    %505 = vmatprep.subr.bf16.mxu0 0
    %506 = vmatpush1.bf16.msra.mxu0 0
    %507 = vmatprep.subr.bf16.mxu0 0
    %508 = vmatpush1.bf16.msra.mxu0 0
    %509 = vmatprep.mubr.bf16.mxu0 0
    %510 = vmatmul.mubr.bf16.gmra.mrb[0].mxu0 %v475
    %v511 = vpop.f32.mrb[0].mxu0
    %v512 = vadd.f32 0.0, %v511
    %v513 = vpop.f32.mrb[0].mxu0
    %v514 = vpop.f32.mrb[0].mxu0
    %v515 = vpop.f32.mrb[0].mxu0
    %516 = vdwg.mxu0
    %v518 = vrot.slane %v512, 6
    %v520 = vadd.f32 %v293, %v518
    %v521 = vpack.c.bf16 %v469, %v469
    %v523 = vrot.slane %v521, 3
    %524 = vrot.lane.b32.xlu0 %v523, 64
    %v525 = vpop.permute.xlu0 %524
    %v527 = vsel %vm321, %v525, 0
    %529 = vmatprep.subr.bf16.mxu0 0
    %530 = vmatpush1.bf16.msra.mxu0 %v374
    %531 = vmatprep.subr.bf16.mxu0 0
    %532 = vmatpush1.bf16.msra.mxu0 %v375
    %533 = vmatprep.subr.bf16.mxu0 0
    %534 = vmatpush1.bf16.msra.mxu0 0
    %535 = vmatprep.subr.bf16.mxu0 0
    %536 = vmatpush1.bf16.msra.mxu0 0
    %537 = vmatprep.subr.bf16.mxu0 0
    %538 = vmatpush1.bf16.msra.mxu0 0
    %539 = vmatprep.subr.bf16.mxu0 0
    %540 = vmatpush1.bf16.msra.mxu0 0
    %541 = vmatprep.subr.bf16.mxu0 0
    %542 = vmatpush1.bf16.msra.mxu0 0
    %543 = vmatprep.subr.bf16.mxu0 0
    %544 = vmatpush1.bf16.msra.mxu0 0
    %545 = vmatprep.subr.bf16.mxu0 0
    %546 = vmatpush1.bf16.msra.mxu0 0
    %547 = vmatprep.subr.bf16.mxu0 0
    %548 = vmatpush1.bf16.msra.mxu0 0
    %549 = vmatprep.subr.bf16.mxu0 0
    %550 = vmatpush1.bf16.msra.mxu0 0
    %551 = vmatprep.subr.bf16.mxu0 0
    %552 = vmatpush1.bf16.msra.mxu0 0
    %553 = vmatprep.subr.bf16.mxu0 0
    %554 = vmatpush1.bf16.msra.mxu0 0
    %555 = vmatprep.subr.bf16.mxu0 0
    %556 = vmatpush1.bf16.msra.mxu0 0
    %557 = vmatprep.subr.bf16.mxu0 0
    %558 = vmatpush1.bf16.msra.mxu0 0
    %559 = vmatprep.subr.bf16.mxu0 0
    %560 = vmatpush1.bf16.msra.mxu0 0
    %561 = vmatprep.mubr.bf16.mxu0 0
    %562 = vmatmul.mubr.bf16.gmra.mrb[0].mxu0 %v527
    %v563 = vpop.f32.mrb[0].mxu0
    %v564 = vadd.f32 0.0, %v563
    %v565 = vpop.f32.mrb[0].mxu0
    %v566 = vpop.f32.mrb[0].mxu0
    %v567 = vpop.f32.mrb[0].mxu0
    %568 = vdwg.mxu0
    %v570 = vrot.slane %v564, 4
    %v572 = vadd.f32 %v299, %v570
    %v573 = vxor.u32 %v520, 2147483648
    %v574 = vmul.f32 %v573, 1.442695
    %v575 = vpow.pop %v574
    %v576 = vadd.f32 %v575, 1.0
    %v577 = vrcp.pop %v576
    %v578 = vmul.f32 1.0, %v577
    %v579 = vtanh.pop %v520
    %v581 = vrot.slane %v439, 6
    %v583 = vmul.f32 %v578, %v581
    %585 = vrot.lane.b32.xlu0 %v579, 32
    %v586 = vpop.permute.xlu0 %585
    %v588 = vmul.f32 %v578, %v586
    %590 = vrot.lane.b32.xlu0 %v588, 32
    %v591 = vpop.permute.xlu0 %590
    %v593 = vadd.f32 %v583, %v591
    %v594 = vtanh.pop %v593
    %596 = vrot.lane.b32.xlu0 %v594, 32
    %v597 = vpop.permute.xlu0 %596
    %v599 = vmul.f32 %v578, %v597
    %v600 = vxor.u32 %v572, 2147483648
    %v601 = vmul.f32 %v600, 1.442695
    %v602 = vpow.pop %v601
    %v603 = vadd.f32 %v602, 1.0
    %v604 = vrcp.pop %v603
    %v605 = vmul.f32 1.0, %v604
    %v606 = vtanh.pop %v572
    %v608 = vrot.slane %v463, 2
    %v610 = vmul.f32 %v605, %v608
    %612 = vrot.lane.b32.xlu0 %v606, 32
    %v613 = vpop.permute.xlu0 %612
    %v615 = vmul.f32 %v605, %v613
    %617 = vrot.lane.b32.xlu0 %v615, 32
    %v618 = vpop.permute.xlu0 %617
    %v620 = vadd.f32 %v610, %v618
    %v621 = vtanh.pop %v620
    %623 = vrot.lane.b32.xlu0 %v621, 32
    %v624 = vpop.permute.xlu0 %623
    %v626 = vmul.f32 %v605, %v624
    %v627 = vpack.c.bf16 %v599, %v599
    %v629 = vrot.slane %v627, 1
    %630 = vrot.lane.b32.xlu0 %v629, 64
    %v631 = vpop.permute.xlu0 %630
    %v633 = vsel %vm321, %v631, 0
    %635 = vmatprep.subr.bf16.mxu0 0
    %636 = vmatpush1.bf16.msra.mxu0 %v317
    %637 = vmatprep.subr.bf16.mxu0 0
    %638 = vmatpush1.bf16.msra.mxu0 %v318
    %639 = vmatprep.subr.bf16.mxu0 0
    %640 = vmatpush1.bf16.msra.mxu0 0
    %641 = vmatprep.subr.bf16.mxu0 0
    %642 = vmatpush1.bf16.msra.mxu0 0
    %643 = vmatprep.subr.bf16.mxu0 0
    %644 = vmatpush1.bf16.msra.mxu0 0
    %645 = vmatprep.subr.bf16.mxu0 0
    %646 = vmatpush1.bf16.msra.mxu0 0
    %647 = vmatprep.subr.bf16.mxu0 0
    %648 = vmatpush1.bf16.msra.mxu0 0
    %649 = vmatprep.subr.bf16.mxu0 0
    %650 = vmatpush1.bf16.msra.mxu0 0
    %651 = vmatprep.subr.bf16.mxu0 0
    %652 = vmatpush1.bf16.msra.mxu0 0
    %653 = vmatprep.subr.bf16.mxu0 0
    %654 = vmatpush1.bf16.msra.mxu0 0
    %655 = vmatprep.subr.bf16.mxu0 0
    %656 = vmatpush1.bf16.msra.mxu0 0
    %657 = vmatprep.subr.bf16.mxu0 0
    %658 = vmatpush1.bf16.msra.mxu0 0
    %659 = vmatprep.subr.bf16.mxu0 0
    %660 = vmatpush1.bf16.msra.mxu0 0
    %661 = vmatprep.subr.bf16.mxu0 0
    %662 = vmatpush1.bf16.msra.mxu0 0
    %663 = vmatprep.subr.bf16.mxu0 0
    %664 = vmatpush1.bf16.msra.mxu0 0
    %665 = vmatprep.subr.bf16.mxu0 0
    %666 = vmatpush1.bf16.msra.mxu0 0
    %667 = vmatprep.mubr.bf16.mxu0 0
    %668 = vmatmul.mubr.bf16.gmra.mrb[0].mxu0 %v633
    %v669 = vpop.f32.mrb[0].mxu0
    %v670 = vadd.f32 0.0, %v669
    %v671 = vpop.f32.mrb[0].mxu0
    %v672 = vpop.f32.mrb[0].mxu0
    %v673 = vpop.f32.mrb[0].mxu0
    %674 = vdwg.mxu0
    %v676 = vrot.slane %v670, 4
    %v678 = vadd.f32 %v293, %v676
    %v679 = vpack.c.bf16 %v626, %v626
    %v681 = vrot.slane %v679, 2
    %682 = vrot.lane.b32.xlu0 %v681, 64
    %v683 = vpop.permute.xlu0 %682
    %v685 = vsel %vm321, %v683, 0
    %687 = vmatprep.subr.bf16.mxu0 0
    %688 = vmatpush1.bf16.msra.mxu0 %v374
    %689 = vmatprep.subr.bf16.mxu0 0
    %690 = vmatpush1.bf16.msra.mxu0 %v375
    %691 = vmatprep.subr.bf16.mxu0 0
    %692 = vmatpush1.bf16.msra.mxu0 0
    %693 = vmatprep.subr.bf16.mxu0 0
    %694 = vmatpush1.bf16.msra.mxu0 0
    %695 = vmatprep.subr.bf16.mxu0 0
    %696 = vmatpush1.bf16.msra.mxu0 0
    %697 = vmatprep.subr.bf16.mxu0 0
    %698 = vmatpush1.bf16.msra.mxu0 0
    %699 = vmatprep.subr.bf16.mxu0 0
    %700 = vmatpush1.bf16.msra.mxu0 0
    %701 = vmatprep.subr.bf16.mxu0 0
    %702 = vmatpush1.bf16.msra.mxu0 0
    %703 = vmatprep.subr.bf16.mxu0 0
    %704 = vmatpush1.bf16.msra.mxu0 0
    %705 = vmatprep.subr.bf16.mxu0 0
    %706 = vmatpush1.bf16.msra.mxu0 0
    %707 = vmatprep.subr.bf16.mxu0 0
    %708 = vmatpush1.bf16.msra.mxu0 0
    %709 = vmatprep.subr.bf16.mxu0 0
    %710 = vmatpush1.bf16.msra.mxu0 0
    %711 = vmatprep.subr.bf16.mxu0 0
    %712 = vmatpush1.bf16.msra.mxu0 0
    %713 = vmatprep.subr.bf16.mxu0 0
    %714 = vmatpush1.bf16.msra.mxu0 0
    %715 = vmatprep.subr.bf16.mxu0 0
    %716 = vmatpush1.bf16.msra.mxu0 0
    %717 = vmatprep.subr.bf16.mxu0 0
    %718 = vmatpush1.bf16.msra.mxu0 0
    %719 = vmatprep.mubr.bf16.mxu0 0
    %720 = vmatmul.mubr.bf16.gmra.mrb[0].mxu0 %v685
    %v721 = vpop.f32.mrb[0].mxu0
    %v722 = vadd.f32 0.0, %v721
    %v723 = vpop.f32.mrb[0].mxu0
    %v724 = vpop.f32.mrb[0].mxu0
    %v725 = vpop.f32.mrb[0].mxu0
    %726 = vdwg.mxu0
    %v728 = vrot.slane %v722, 6
    %v730 = vadd.f32 %v299, %v728
    %v731 = vxor.u32 %v678, 2147483648
    %v732 = vmul.f32 %v731, 1.442695
    %v733 = vpow.pop %v732
    %v734 = vadd.f32 %v733, 1.0
    %v735 = vrcp.pop %v734
    %v736 = vmul.f32 1.0, %v735
    %v737 = vtanh.pop %v678
    %v739 = vrot.slane %v593, 6
    %v741 = vmul.f32 %v736, %v739
    %743 = vrot.lane.b32.xlu0 %v737, 32
    %v744 = vpop.permute.xlu0 %743
    %v746 = vmul.f32 %v736, %v744
    %748 = vrot.lane.b32.xlu0 %v746, 32
    %v749 = vpop.permute.xlu0 %748
    %v751 = vadd.f32 %v741, %v749
    %v752 = vtanh.pop %v751
    %754 = vrot.lane.b32.xlu0 %v752, 32
    %v755 = vpop.permute.xlu0 %754
    %v757 = vmul.f32 %v736, %v755
    %v758 = vxor.u32 %v730, 2147483648
    %v759 = vmul.f32 %v758, 1.442695
    %v760 = vpow.pop %v759
    %v761 = vadd.f32 %v760, 1.0
    %v762 = vrcp.pop %v761
    %v763 = vmul.f32 1.0, %v762
    %v764 = vtanh.pop %v730
    %v766 = vrot.slane %v620, 2
    %v768 = vmul.f32 %v763, %v766
    %770 = vrot.lane.b32.xlu0 %v764, 32
    %v771 = vpop.permute.xlu0 %770
    %v773 = vmul.f32 %v763, %v771
    %775 = vrot.lane.b32.xlu0 %v773, 32
    %v776 = vpop.permute.xlu0 %775
    %v778 = vadd.f32 %v768, %v776
    %v779 = vtanh.pop %v778
    %781 = vrot.lane.b32.xlu0 %v779, 32
    %v782 = vpop.permute.xlu0 %781
    %v784 = vmul.f32 %v763, %v782
    %v785 = vpack.c.bf16 %v757, %v757
    %v787 = vrot.slane %v785, 2
    %788 = vrot.lane.b32.xlu0 %v787, 64
    %v789 = vpop.permute.xlu0 %788
    %v791 = vsel %vm321, %v789, 0
    %793 = vmatprep.subr.bf16.mxu0 0
    %794 = vmatpush1.bf16.msra.mxu0 %v317
    %795 = vmatprep.subr.bf16.mxu0 0
    %796 = vmatpush1.bf16.msra.mxu0 %v318
    %797 = vmatprep.subr.bf16.mxu0 0
    %798 = vmatpush1.bf16.msra.mxu0 0
    %799 = vmatprep.subr.bf16.mxu0 0
    %800 = vmatpush1.bf16.msra.mxu0 0
    %801 = vmatprep.subr.bf16.mxu0 0
    %802 = vmatpush1.bf16.msra.mxu0 0
    %803 = vmatprep.subr.bf16.mxu0 0
    %804 = vmatpush1.bf16.msra.mxu0 0
    %805 = vmatprep.subr.bf16.mxu0 0
    %806 = vmatpush1.bf16.msra.mxu0 0
    %807 = vmatprep.subr.bf16.mxu0 0
    %808 = vmatpush1.bf16.msra.mxu0 0
    %809 = vmatprep.subr.bf16.mxu0 0
    %810 = vmatpush1.bf16.msra.mxu0 0
    %811 = vmatprep.subr.bf16.mxu0 0
    %812 = vmatpush1.bf16.msra.mxu0 0
    %813 = vmatprep.subr.bf16.mxu0 0
    %814 = vmatpush1.bf16.msra.mxu0 0
    %815 = vmatprep.subr.bf16.mxu0 0
    %816 = vmatpush1.bf16.msra.mxu0 0
    %817 = vmatprep.subr.bf16.mxu0 0
    %818 = vmatpush1.bf16.msra.mxu0 0
    %819 = vmatprep.subr.bf16.mxu0 0
    %820 = vmatpush1.bf16.msra.mxu0 0
    %821 = vmatprep.subr.bf16.mxu0 0
    %822 = vmatpush1.bf16.msra.mxu0 0
    %823 = vmatprep.subr.bf16.mxu0 0
    %824 = vmatpush1.bf16.msra.mxu0 0
    %825 = vmatprep.mubr.bf16.mxu0 0
    %826 = vmatmul.mubr.bf16.gmra.mrb[0].mxu0 %v791
    %v827 = vpop.f32.mrb[0].mxu0
    %v828 = vadd.f32 0.0, %v827
    %v829 = vpop.f32.mrb[0].mxu0
    %v830 = vpop.f32.mrb[0].mxu0
    %v831 = vpop.f32.mrb[0].mxu0
    %832 = vdwg.mxu0
    %v834 = vrot.slane %v828, 2
    %v836 = vadd.f32 %v293, %v834
    %v837 = vpack.c.bf16 %v784, %v784
    %v839 = vrot.slane %v837, 1
    %840 = vrot.lane.b32.xlu0 %v839, 64
    %v841 = vpop.permute.xlu0 %840
    %v843 = vsel %vm321, %v841, 0
    %845 = vmatprep.subr.bf16.mxu0 0
    %846 = vmatpush1.bf16.msra.mxu0 %v374
    %847 = vmatprep.subr.bf16.mxu0 0
    %848 = vmatpush1.bf16.msra.mxu0 %v375
    %849 = vmatprep.subr.bf16.mxu0 0
    %850 = vmatpush1.bf16.msra.mxu0 0
    %851 = vmatprep.subr.bf16.mxu0 0
    %852 = vmatpush1.bf16.msra.mxu0 0
    %853 = vmatprep.subr.bf16.mxu0 0
    %854 = vmatpush1.bf16.msra.mxu0 0
    %855 = vmatprep.subr.bf16.mxu0 0
    %856 = vmatpush1.bf16.msra.mxu0 0
    %857 = vmatprep.subr.bf16.mxu0 0
    %858 = vmatpush1.bf16.msra.mxu0 0
    %859 = vmatprep.subr.bf16.mxu0 0
    %860 = vmatpush1.bf16.msra.mxu0 0
    %861 = vmatprep.subr.bf16.mxu0 0
    %862 = vmatpush1.bf16.msra.mxu0 0
    %863 = vmatprep.subr.bf16.mxu0 0
    %864 = vmatpush1.bf16.msra.mxu0 0
    %865 = vmatprep.subr.bf16.mxu0 0
    %866 = vmatpush1.bf16.msra.mxu0 0
    %867 = vmatprep.subr.bf16.mxu0 0
    %868 = vmatpush1.bf16.msra.mxu0 0
    %869 = vmatprep.subr.bf16.mxu0 0
    %870 = vmatpush1.bf16.msra.mxu0 0
    %871 = vmatprep.subr.bf16.mxu0 0
    %872 = vmatpush1.bf16.msra.mxu0 0
    %873 = vmatprep.subr.bf16.mxu0 0
    %874 = vmatpush1.bf16.msra.mxu0 0
    %875 = vmatprep.subr.bf16.mxu0 0
    %876 = vmatpush1.bf16.msra.mxu0 0
    %877 = vmatprep.mubr.bf16.mxu0 0
    %878 = vmatmul.mubr.bf16.gmra.mrb[0].mxu0 %v843
    %v879 = vpop.f32.mrb[0].mxu0
    %v880 = vadd.f32 0.0, %v879
    %v881 = vpop.f32.mrb[0].mxu0
    %v882 = vpop.f32.mrb[0].mxu0
    %v883 = vpop.f32.mrb[0].mxu0
    %884 = vdwg.mxu0
    %v885 = vadd.f32 %v299, %v880
    %v886 = vxor.u32 %v836, 2147483648
    %v887 = vmul.f32 %v886, 1.442695
    %v888 = vpow.pop %v887
    %v889 = vadd.f32 %v888, 1.0
    %v890 = vrcp.pop %v889
    %v891 = vmul.f32 1.0, %v890
    %v892 = vtanh.pop %v836
    %v894 = vrot.slane %v751, 6
    %v896 = vmul.f32 %v891, %v894
    %898 = vrot.lane.b32.xlu0 %v892, 32
    %v899 = vpop.permute.xlu0 %898
    %v901 = vmul.f32 %v891, %v899
    %903 = vrot.lane.b32.xlu0 %v901, 32
    %v904 = vpop.permute.xlu0 %903
    %v906 = vadd.f32 %v896, %v904
    %v907 = vtanh.pop %v906
    %909 = vrot.lane.b32.xlu0 %v907, 32
    %v910 = vpop.permute.xlu0 %909
    %v912 = vmul.f32 %v891, %v910
    %v913 = vxor.u32 %v885, 2147483648
    %v914 = vmul.f32 %v913, 1.442695
    %v915 = vpow.pop %v914
    %v916 = vadd.f32 %v915, 1.0
    %v917 = vrcp.pop %v916
    %v918 = vmul.f32 1.0, %v917
    %v919 = vtanh.pop %v885
    %v921 = vrot.slane %v778, 2
    %v923 = vmul.f32 %v918, %v921
    %925 = vrot.lane.b32.xlu0 %v919, 32
    %v926 = vpop.permute.xlu0 %925
    %v928 = vmul.f32 %v918, %v926
    %930 = vrot.lane.b32.xlu0 %v928, 32
    %v931 = vpop.permute.xlu0 %930
    %v933 = vadd.f32 %v923, %v931
    %v934 = vtanh.pop %v933
    %936 = vrot.lane.b32.xlu0 %v934, 32
    %v937 = vpop.permute.xlu0 %936
    %v939 = vmul.f32 %v918, %v937
    %v940 = vpack.c.bf16 %v912, %v912
    %v942 = vrot.slane %v940, 3
    %943 = vrot.lane.b32.xlu0 %v942, 64
    %v944 = vpop.permute.xlu0 %943
    %v946 = vsel %vm321, %v944, 0
    %948 = vmatprep.subr.bf16.mxu0 0
    %949 = vmatpush1.bf16.msra.mxu0 %v317
    %950 = vmatprep.subr.bf16.mxu0 0
    %951 = vmatpush1.bf16.msra.mxu0 %v318
    %952 = vmatprep.subr.bf16.mxu0 0
    %953 = vmatpush1.bf16.msra.mxu0 0
    %954 = vmatprep.subr.bf16.mxu0 0
    %955 = vmatpush1.bf16.msra.mxu0 0
    %956 = vmatprep.subr.bf16.mxu0 0
    %957 = vmatpush1.bf16.msra.mxu0 0
    %958 = vmatprep.subr.bf16.mxu0 0
    %959 = vmatpush1.bf16.msra.mxu0 0
    %960 = vmatprep.subr.bf16.mxu0 0
    %961 = vmatpush1.bf16.msra.mxu0 0
    %962 = vmatprep.subr.bf16.mxu0 0
    %963 = vmatpush1.bf16.msra.mxu0 0
    %964 = vmatprep.subr.bf16.mxu0 0
    %965 = vmatpush1.bf16.msra.mxu0 0
    %966 = vmatprep.subr.bf16.mxu0 0
    %967 = vmatpush1.bf16.msra.mxu0 0
    %968 = vmatprep.subr.bf16.mxu0 0
    %969 = vmatpush1.bf16.msra.mxu0 0
    %970 = vmatprep.subr.bf16.mxu0 0
    %971 = vmatpush1.bf16.msra.mxu0 0
    %972 = vmatprep.subr.bf16.mxu0 0
    %973 = vmatpush1.bf16.msra.mxu0 0
    %974 = vmatprep.subr.bf16.mxu0 0
    %975 = vmatpush1.bf16.msra.mxu0 0
    %976 = vmatprep.subr.bf16.mxu0 0
    %977 = vmatpush1.bf16.msra.mxu0 0
    %978 = vmatprep.subr.bf16.mxu0 0
    %979 = vmatpush1.bf16.msra.mxu0 0
    %980 = vmatprep.mubr.bf16.mxu0 0
    %981 = vmatmul.mubr.bf16.gmra.mrb[0].mxu0 %v946
    %v982 = vpop.f32.mrb[0].mxu0
    %v983 = vadd.f32 0.0, %v982
    %v984 = vpop.f32.mrb[0].mxu0
    %v985 = vpop.f32.mrb[0].mxu0
    %v986 = vpop.f32.mrb[0].mxu0
    %987 = vdwg.mxu0
    %v988 = vadd.f32 %v297, %v983
    %v989 = vpack.c.bf16 %v939, %v939
    %991 = vrot.lane.b32.xlu0 %v989, 64
    %v992 = vpop.permute.xlu0 %991
    %v994 = vsel %vm321, %v992, 0
    %996 = vmatprep.subr.bf16.mxu0 0
    %997 = vmatpush1.bf16.msra.mxu0 %v374
    %998 = vmatprep.subr.bf16.mxu0 0
    %999 = vmatpush1.bf16.msra.mxu0 %v375
    %1000 = vmatprep.subr.bf16.mxu0 0
    %1001 = vmatpush1.bf16.msra.mxu0 0
    %1002 = vmatprep.subr.bf16.mxu0 0
    %1003 = vmatpush1.bf16.msra.mxu0 0
    %1004 = vmatprep.subr.bf16.mxu0 0
    %1005 = vmatpush1.bf16.msra.mxu0 0
    %1006 = vmatprep.subr.bf16.mxu0 0
    %1007 = vmatpush1.bf16.msra.mxu0 0
    %1008 = vmatprep.subr.bf16.mxu0 0
    %1009 = vmatpush1.bf16.msra.mxu0 0
    %1010 = vmatprep.subr.bf16.mxu0 0
    %1011 = vmatpush1.bf16.msra.mxu0 0
    %1012 = vmatprep.subr.bf16.mxu0 0
    %1013 = vmatpush1.bf16.msra.mxu0 0
    %1014 = vmatprep.subr.bf16.mxu0 0
    %1015 = vmatpush1.bf16.msra.mxu0 0
    %1016 = vmatprep.subr.bf16.mxu0 0
    %1017 = vmatpush1.bf16.msra.mxu0 0
    %1018 = vmatprep.subr.bf16.mxu0 0
    %1019 = vmatpush1.bf16.msra.mxu0 0
    %1020 = vmatprep.subr.bf16.mxu0 0
    %1021 = vmatpush1.bf16.msra.mxu0 0
    %1022 = vmatprep.subr.bf16.mxu0 0
    %1023 = vmatpush1.bf16.msra.mxu0 0
    %1024 = vmatprep.subr.bf16.mxu0 0
    %1025 = vmatpush1.bf16.msra.mxu0 0
    %1026 = vmatprep.subr.bf16.mxu0 0
    %1027 = vmatpush1.bf16.msra.mxu0 0
    %1028 = vmatprep.mubr.bf16.mxu0 0
    %1029 = vmatmul.mubr.bf16.gmra.mrb[0].mxu0 %v994
    %v1030 = vpop.f32.mrb[0].mxu0
    %v1031 = vadd.f32 0.0, %v1030
    %v1032 = vpop.f32.mrb[0].mxu0
    %v1033 = vpop.f32.mrb[0].mxu0
    %v1034 = vpop.f32.mrb[0].mxu0
    %1035 = vdwg.mxu0
    %v1037 = vrot.slane %v1031, 2
    %v1039 = vadd.f32 %v295, %v1037
    %v1040 = vxor.u32 %v988, 2147483648
    %v1041 = vmul.f32 %v1040, 1.442695
    %v1042 = vpow.pop %v1041
    %v1043 = vadd.f32 %v1042, 1.0
    %v1044 = vrcp.pop %v1043
    %v1045 = vmul.f32 1.0, %v1044
    %v1046 = vtanh.pop %v988
    %v1048 = vrot.slane %v906, 6
    %v1050 = vmul.f32 %v1045, %v1048
    %1052 = vrot.lane.b32.xlu0 %v1046, 32
    %v1053 = vpop.permute.xlu0 %1052
    %v1055 = vmul.f32 %v1045, %v1053
    %1057 = vrot.lane.b32.xlu0 %v1055, 32
    %v1058 = vpop.permute.xlu0 %1057
    %v1060 = vadd.f32 %v1050, %v1058
    %v1061 = vtanh.pop %v1060
    %1063 = vrot.lane.b32.xlu0 %v1061, 32
    %v1064 = vpop.permute.xlu0 %1063
    %v1066 = vmul.f32 %v1045, %v1064
    %v1067 = vxor.u32 %v1039, 2147483648
    %v1068 = vmul.f32 %v1067, 1.442695
    %v1069 = vpow.pop %v1068
    %v1070 = vadd.f32 %v1069, 1.0
    %v1071 = vrcp.pop %v1070
    %v1072 = vmul.f32 1.0, %v1071
    %v1073 = vtanh.pop %v1039
    %v1075 = vrot.slane %v933, 2
    %v1077 = vmul.f32 %v1072, %v1075
    %1079 = vrot.lane.b32.xlu0 %v1073, 32
    %v1080 = vpop.permute.xlu0 %1079
    %v1082 = vmul.f32 %v1072, %v1080
    %1084 = vrot.lane.b32.xlu0 %v1082, 32
    %v1085 = vpop.permute.xlu0 %1084
    %v1087 = vadd.f32 %v1077, %v1085
    %v1088 = vtanh.pop %v1087
    %1090 = vrot.lane.b32.xlu0 %v1088, 32
    %v1091 = vpop.permute.xlu0 %1090
    %v1093 = vmul.f32 %v1072, %v1091
    %v1094 = vpack.c.bf16 %v1066, %v1066
    %1096 = vrot.lane.b32.xlu0 %v1094, 64
    %v1097 = vpop.permute.xlu0 %1096
    %v1099 = vsel %vm321, %v1097, 0
    %1101 = vmatprep.subr.bf16.mxu0 0
    %1102 = vmatpush1.bf16.msra.mxu0 %v317
    %1103 = vmatprep.subr.bf16.mxu0 0
    %1104 = vmatpush1.bf16.msra.mxu0 %v318
    %1105 = vmatprep.subr.bf16.mxu0 0
    %1106 = vmatpush1.bf16.msra.mxu0 0
    %1107 = vmatprep.subr.bf16.mxu0 0
    %1108 = vmatpush1.bf16.msra.mxu0 0
    %1109 = vmatprep.subr.bf16.mxu0 0
    %1110 = vmatpush1.bf16.msra.mxu0 0
    %1111 = vmatprep.subr.bf16.mxu0 0
    %1112 = vmatpush1.bf16.msra.mxu0 0
    %1113 = vmatprep.subr.bf16.mxu0 0
    %1114 = vmatpush1.bf16.msra.mxu0 0
    %1115 = vmatprep.subr.bf16.mxu0 0
    %1116 = vmatpush1.bf16.msra.mxu0 0
    %1117 = vmatprep.subr.bf16.mxu0 0
    %1118 = vmatpush1.bf16.msra.mxu0 0
    %1119 = vmatprep.subr.bf16.mxu0 0
    %1120 = vmatpush1.bf16.msra.mxu0 0
    %1121 = vmatprep.subr.bf16.mxu0 0
    %1122 = vmatpush1.bf16.msra.mxu0 0
    %1123 = vmatprep.subr.bf16.mxu0 0
    %1124 = vmatpush1.bf16.msra.mxu0 0
    %1125 = vmatprep.subr.bf16.mxu0 0
    %1126 = vmatpush1.bf16.msra.mxu0 0
    %1127 = vmatprep.subr.bf16.mxu0 0
    %1128 = vmatpush1.bf16.msra.mxu0 0
    %1129 = vmatprep.subr.bf16.mxu0 0
    %1130 = vmatpush1.bf16.msra.mxu0 0
    %1131 = vmatprep.subr.bf16.mxu0 0
    %1132 = vmatpush1.bf16.msra.mxu0 0
    %1133 = vmatprep.mubr.bf16.mxu0 0
    %1134 = vmatmul.mubr.bf16.gmra.mrb[0].mxu0 %v1099
    %v1135 = vpop.f32.mrb[0].mxu0
    %v1136 = vadd.f32 0.0, %v1135
    %v1137 = vpop.f32.mrb[0].mxu0
    %v1138 = vpop.f32.mrb[0].mxu0
    %v1139 = vpop.f32.mrb[0].mxu0
    %1140 = vdwg.mxu0
    %v1142 = vrot.slane %v1136, 6
    %v1144 = vadd.f32 %v297, %v1142
    %v1145 = vpack.c.bf16 %v1093, %v1093
    %v1147 = vrot.slane %v1145, 3
    %1148 = vrot.lane.b32.xlu0 %v1147, 64
    %v1149 = vpop.permute.xlu0 %1148
    %v1151 = vsel %vm321, %v1149, 0
    %1153 = vmatprep.subr.bf16.mxu0 0
    %1154 = vmatpush1.bf16.msra.mxu0 %v374
    %1155 = vmatprep.subr.bf16.mxu0 0
    %1156 = vmatpush1.bf16.msra.mxu0 %v375
    %1157 = vmatprep.subr.bf16.mxu0 0
    %1158 = vmatpush1.bf16.msra.mxu0 0
    %1159 = vmatprep.subr.bf16.mxu0 0
    %1160 = vmatpush1.bf16.msra.mxu0 0
    %1161 = vmatprep.subr.bf16.mxu0 0
    %1162 = vmatpush1.bf16.msra.mxu0 0
    %1163 = vmatprep.subr.bf16.mxu0 0
    %1164 = vmatpush1.bf16.msra.mxu0 0
    %1165 = vmatprep.subr.bf16.mxu0 0
    %1166 = vmatpush1.bf16.msra.mxu0 0
    %1167 = vmatprep.subr.bf16.mxu0 0
    %1168 = vmatpush1.bf16.msra.mxu0 0
    %1169 = vmatprep.subr.bf16.mxu0 0
    %1170 = vmatpush1.bf16.msra.mxu0 0
    %1171 = vmatprep.subr.bf16.mxu0 0
    %1172 = vmatpush1.bf16.msra.mxu0 0
    %1173 = vmatprep.subr.bf16.mxu0 0
    %1174 = vmatpush1.bf16.msra.mxu0 0
    %1175 = vmatprep.subr.bf16.mxu0 0
    %1176 = vmatpush1.bf16.msra.mxu0 0
    %1177 = vmatprep.subr.bf16.mxu0 0
    %1178 = vmatpush1.bf16.msra.mxu0 0
    %1179 = vmatprep.subr.bf16.mxu0 0
    %1180 = vmatpush1.bf16.msra.mxu0 0
    %1181 = vmatprep.subr.bf16.mxu0 0
    %1182 = vmatpush1.bf16.msra.mxu0 0
    %1183 = vmatprep.subr.bf16.mxu0 0
    %1184 = vmatpush1.bf16.msra.mxu0 0
    %1185 = vmatprep.mubr.bf16.mxu0 0
    %1186 = vmatmul.mubr.bf16.gmra.mrb[0].mxu0 %v1151
    %v1187 = vpop.f32.mrb[0].mxu0
    %v1188 = vadd.f32 0.0, %v1187
    %v1189 = vpop.f32.mrb[0].mxu0
    %v1190 = vpop.f32.mrb[0].mxu0
    %v1191 = vpop.f32.mrb[0].mxu0
    %1192 = vdwg.mxu0
    %v1194 = vrot.slane %v1188, 4
    %v1196 = vadd.f32 %v295, %v1194
    %v1197 = vxor.u32 %v1144, 2147483648
    %v1198 = vmul.f32 %v1197, 1.442695
    %v1199 = vpow.pop %v1198
    %v1200 = vadd.f32 %v1199, 1.0
    %v1201 = vrcp.pop %v1200
    %v1202 = vmul.f32 1.0, %v1201
    %v1203 = vtanh.pop %v1144
    %v1205 = vrot.slane %v1060, 6
    %v1207 = vmul.f32 %v1202, %v1205
    %1209 = vrot.lane.b32.xlu0 %v1203, 32
    %v1210 = vpop.permute.xlu0 %1209
    %v1212 = vmul.f32 %v1202, %v1210
    %1214 = vrot.lane.b32.xlu0 %v1212, 32
    %v1215 = vpop.permute.xlu0 %1214
    %v1217 = vadd.f32 %v1207, %v1215
    %v1218 = vtanh.pop %v1217
    %1220 = vrot.lane.b32.xlu0 %v1218, 32
    %v1221 = vpop.permute.xlu0 %1220
    %v1223 = vmul.f32 %v1202, %v1221
    %v1224 = vxor.u32 %v1196, 2147483648
    %v1225 = vmul.f32 %v1224, 1.442695
    %v1226 = vpow.pop %v1225
    %v1227 = vadd.f32 %v1226, 1.0
    %v1228 = vrcp.pop %v1227
    %v1229 = vmul.f32 1.0, %v1228
    %v1230 = vtanh.pop %v1196
    %v1232 = vrot.slane %v1087, 2
    %v1234 = vmul.f32 %v1229, %v1232
    %1236 = vrot.lane.b32.xlu0 %v1230, 32
    %v1237 = vpop.permute.xlu0 %1236
    %v1239 = vmul.f32 %v1229, %v1237
    %1241 = vrot.lane.b32.xlu0 %v1239, 32
    %v1242 = vpop.permute.xlu0 %1241
    %v1244 = vadd.f32 %v1234, %v1242
    %v1245 = vtanh.pop %v1244
    %1247 = vrot.lane.b32.xlu0 %v1245, 32
    %v1248 = vpop.permute.xlu0 %1247
    %v1250 = vmul.f32 %v1229, %v1248
    %v1251 = vpack.c.bf16 %v1223, %v1223
    %v1253 = vrot.slane %v1251, 1
    %1254 = vrot.lane.b32.xlu0 %v1253, 64
    %v1255 = vpop.permute.xlu0 %1254
    %v1257 = vsel %vm321, %v1255, 0
    %1259 = vmatprep.subr.bf16.mxu0 0
    %1260 = vmatpush1.bf16.msra.mxu0 %v317
    %1261 = vmatprep.subr.bf16.mxu0 0
    %1262 = vmatpush1.bf16.msra.mxu0 %v318
    %1263 = vmatprep.subr.bf16.mxu0 0
    %1264 = vmatpush1.bf16.msra.mxu0 0
    %1265 = vmatprep.subr.bf16.mxu0 0
    %1266 = vmatpush1.bf16.msra.mxu0 0
    %1267 = vmatprep.subr.bf16.mxu0 0
    %1268 = vmatpush1.bf16.msra.mxu0 0
    %1269 = vmatprep.subr.bf16.mxu0 0
    %1270 = vmatpush1.bf16.msra.mxu0 0
    %1271 = vmatprep.subr.bf16.mxu0 0
    %1272 = vmatpush1.bf16.msra.mxu0 0
    %1273 = vmatprep.subr.bf16.mxu0 0
    %1274 = vmatpush1.bf16.msra.mxu0 0
    %1275 = vmatprep.subr.bf16.mxu0 0
    %1276 = vmatpush1.bf16.msra.mxu0 0
    %1277 = vmatprep.subr.bf16.mxu0 0
    %1278 = vmatpush1.bf16.msra.mxu0 0
    %1279 = vmatprep.subr.bf16.mxu0 0
    %1280 = vmatpush1.bf16.msra.mxu0 0
    %1281 = vmatprep.subr.bf16.mxu0 0
    %1282 = vmatpush1.bf16.msra.mxu0 0
    %1283 = vmatprep.subr.bf16.mxu0 0
    %1284 = vmatpush1.bf16.msra.mxu0 0
    %1285 = vmatprep.subr.bf16.mxu0 0
    %1286 = vmatpush1.bf16.msra.mxu0 0
    %1287 = vmatprep.subr.bf16.mxu0 0
    %1288 = vmatpush1.bf16.msra.mxu0 0
    %1289 = vmatprep.subr.bf16.mxu0 0
    %1290 = vmatpush1.bf16.msra.mxu0 0
    %1291 = vmatprep.mubr.bf16.mxu0 0
    %1292 = vmatmul.mubr.bf16.gmra.mrb[0].mxu0 %v1257
    %v1293 = vpop.f32.mrb[0].mxu0
    %v1294 = vadd.f32 0.0, %v1293
    %v1295 = vpop.f32.mrb[0].mxu0
    %v1296 = vpop.f32.mrb[0].mxu0
    %v1297 = vpop.f32.mrb[0].mxu0
    %1298 = vdwg.mxu0
    %v1300 = vrot.slane %v1294, 4
    %v1302 = vadd.f32 %v297, %v1300
    %v1303 = vpack.c.bf16 %v1250, %v1250
    %v1305 = vrot.slane %v1303, 2
    %1306 = vrot.lane.b32.xlu0 %v1305, 64
    %v1307 = vpop.permute.xlu0 %1306
    %v1309 = vsel %vm321, %v1307, 0
    %1311 = vmatprep.subr.bf16.mxu0 0
    %1312 = vmatpush1.bf16.msra.mxu0 %v374
    %1313 = vmatprep.subr.bf16.mxu0 0
    %1314 = vmatpush1.bf16.msra.mxu0 %v375
    %1315 = vmatprep.subr.bf16.mxu0 0
    %1316 = vmatpush1.bf16.msra.mxu0 0
    %1317 = vmatprep.subr.bf16.mxu0 0
    %1318 = vmatpush1.bf16.msra.mxu0 0
    %1319 = vmatprep.subr.bf16.mxu0 0
    %1320 = vmatpush1.bf16.msra.mxu0 0
    %1321 = vmatprep.subr.bf16.mxu0 0
    %1322 = vmatpush1.bf16.msra.mxu0 0
    %1323 = vmatprep.subr.bf16.mxu0 0
    %1324 = vmatpush1.bf16.msra.mxu0 0
    %1325 = vmatprep.subr.bf16.mxu0 0
    %1326 = vmatpush1.bf16.msra.mxu0 0
    %1327 = vmatprep.subr.bf16.mxu0 0
    %1328 = vmatpush1.bf16.msra.mxu0 0
    %1329 = vmatprep.subr.bf16.mxu0 0
    %1330 = vmatpush1.bf16.msra.mxu0 0
    %1331 = vmatprep.subr.bf16.mxu0 0
    %1332 = vmatpush1.bf16.msra.mxu0 0
    %1333 = vmatprep.subr.bf16.mxu0 0
    %1334 = vmatpush1.bf16.msra.mxu0 0
    %1335 = vmatprep.subr.bf16.mxu0 0
    %1336 = vmatpush1.bf16.msra.mxu0 0
    %1337 = vmatprep.subr.bf16.mxu0 0
    %1338 = vmatpush1.bf16.msra.mxu0 0
    %1339 = vmatprep.subr.bf16.mxu0 0
    %1340 = vmatpush1.bf16.msra.mxu0 0
    %1341 = vmatprep.subr.bf16.mxu0 0
    %1342 = vmatpush1.bf16.msra.mxu0 0
    %1343 = vmatprep.mubr.bf16.mxu0 0
    %1344 = vmatmul.mubr.bf16.gmra.mrb[0].mxu0 %v1309
    %v1345 = vpop.f32.mrb[0].mxu0
    %v1346 = vadd.f32 0.0, %v1345
    %v1347 = vpop.f32.mrb[0].mxu0
    %v1348 = vpop.f32.mrb[0].mxu0
    %v1349 = vpop.f32.mrb[0].mxu0
    %1350 = vdwg.mxu0
    %v1352 = vrot.slane %v1346, 6
    %v1354 = vadd.f32 %v295, %v1352
    %v1355 = vxor.u32 %v1302, 2147483648
    %v1356 = vmul.f32 %v1355, 1.442695
    %v1357 = vpow.pop %v1356
    %v1358 = vadd.f32 %v1357, 1.0
    %v1359 = vrcp.pop %v1358
    %v1360 = vmul.f32 1.0, %v1359
    %v1361 = vtanh.pop %v1302
    %v1363 = vrot.slane %v1217, 6
    %v1365 = vmul.f32 %v1360, %v1363
    %1367 = vrot.lane.b32.xlu0 %v1361, 32
    %v1368 = vpop.permute.xlu0 %1367
    %v1370 = vmul.f32 %v1360, %v1368
    %1372 = vrot.lane.b32.xlu0 %v1370, 32
    %v1373 = vpop.permute.xlu0 %1372
    %v1375 = vadd.f32 %v1365, %v1373
    %v1376 = vtanh.pop %v1375
    %1378 = vrot.lane.b32.xlu0 %v1376, 32
    %v1379 = vpop.permute.xlu0 %1378
    %v1381 = vmul.f32 %v1360, %v1379
    %v1382 = vxor.u32 %v1354, 2147483648
    %v1383 = vmul.f32 %v1382, 1.442695
    %v1384 = vpow.pop %v1383
    %v1385 = vadd.f32 %v1384, 1.0
    %v1386 = vrcp.pop %v1385
    %v1387 = vmul.f32 1.0, %v1386
    %v1388 = vtanh.pop %v1354
    %v1390 = vrot.slane %v1244, 2
    %v1392 = vmul.f32 %v1387, %v1390
    %1394 = vrot.lane.b32.xlu0 %v1388, 32
    %v1395 = vpop.permute.xlu0 %1394
    %v1397 = vmul.f32 %v1387, %v1395
    %1399 = vrot.lane.b32.xlu0 %v1397, 32
    %v1400 = vpop.permute.xlu0 %1399
    %v1402 = vadd.f32 %v1392, %v1400
    %v1403 = vtanh.pop %v1402
    %1405 = vrot.lane.b32.xlu0 %v1403, 32
    %v1406 = vpop.permute.xlu0 %1405
    %v1408 = vmul.f32 %v1387, %v1406
    %v1409 = vpack.c.bf16 %v1381, %v1381
    %v1411 = vrot.slane %v1409, 2
    %1412 = vrot.lane.b32.xlu0 %v1411, 64
    %v1413 = vpop.permute.xlu0 %1412
    %v1415 = vsel %vm321, %v1413, 0
    %1417 = vmatprep.subr.bf16.mxu0 0
    %1418 = vmatpush1.bf16.msra.mxu0 %v317
    %1419 = vmatprep.subr.bf16.mxu0 0
    %1420 = vmatpush1.bf16.msra.mxu0 %v318
    %1421 = vmatprep.subr.bf16.mxu0 0
    %1422 = vmatpush1.bf16.msra.mxu0 0
    %1423 = vmatprep.subr.bf16.mxu0 0
    %1424 = vmatpush1.bf16.msra.mxu0 0
    %1425 = vmatprep.subr.bf16.mxu0 0
    %1426 = vmatpush1.bf16.msra.mxu0 0
    %1427 = vmatprep.subr.bf16.mxu0 0
    %1428 = vmatpush1.bf16.msra.mxu0 0
    %1429 = vmatprep.subr.bf16.mxu0 0
    %1430 = vmatpush1.bf16.msra.mxu0 0
    %1431 = vmatprep.subr.bf16.mxu0 0
    %1432 = vmatpush1.bf16.msra.mxu0 0
    %1433 = vmatprep.subr.bf16.mxu0 0
    %1434 = vmatpush1.bf16.msra.mxu0 0
    %1435 = vmatprep.subr.bf16.mxu0 0
    %1436 = vmatpush1.bf16.msra.mxu0 0
    %1437 = vmatprep.subr.bf16.mxu0 0
    %1438 = vmatpush1.bf16.msra.mxu0 0
    %1439 = vmatprep.subr.bf16.mxu0 0
    %1440 = vmatpush1.bf16.msra.mxu0 0
    %1441 = vmatprep.subr.bf16.mxu0 0
    %1442 = vmatpush1.bf16.msra.mxu0 0
    %1443 = vmatprep.subr.bf16.mxu0 0
    %1444 = vmatpush1.bf16.msra.mxu0 0
    %1445 = vmatprep.subr.bf16.mxu0 0
    %1446 = vmatpush1.bf16.msra.mxu0 0
    %1447 = vmatprep.subr.bf16.mxu0 0
    %1448 = vmatpush1.bf16.msra.mxu0 0
    %1449 = vmatprep.mubr.bf16.mxu0 0
    %1450 = vmatmul.mubr.bf16.gmra.mrb[0].mxu0 %v1415
    %v1451 = vpop.f32.mrb[0].mxu0
    %v1452 = vadd.f32 0.0, %v1451
    %v1453 = vpop.f32.mrb[0].mxu0
    %v1454 = vpop.f32.mrb[0].mxu0
    %v1455 = vpop.f32.mrb[0].mxu0
    %1456 = vdwg.mxu0
    %v1458 = vrot.slane %v1452, 2
    %v1460 = vadd.f32 %v297, %v1458
    %v1461 = vpack.c.bf16 %v1408, %v1408
    %v1463 = vrot.slane %v1461, 1
    %1464 = vrot.lane.b32.xlu0 %v1463, 64
    %v1465 = vpop.permute.xlu0 %1464
    %v1467 = vsel %vm321, %v1465, 0
    %1469 = vmatprep.subr.bf16.mxu0 0
    %1470 = vmatpush1.bf16.msra.mxu0 %v374
    %1471 = vmatprep.subr.bf16.mxu0 0
    %1472 = vmatpush1.bf16.msra.mxu0 %v375
    %1473 = vmatprep.subr.bf16.mxu0 0
    %1474 = vmatpush1.bf16.msra.mxu0 0
    %1475 = vmatprep.subr.bf16.mxu0 0
    %1476 = vmatpush1.bf16.msra.mxu0 0
    %1477 = vmatprep.subr.bf16.mxu0 0
    %1478 = vmatpush1.bf16.msra.mxu0 0
    %1479 = vmatprep.subr.bf16.mxu0 0
    %1480 = vmatpush1.bf16.msra.mxu0 0
    %1481 = vmatprep.subr.bf16.mxu0 0
    %1482 = vmatpush1.bf16.msra.mxu0 0
    %1483 = vmatprep.subr.bf16.mxu0 0
    %1484 = vmatpush1.bf16.msra.mxu0 0
    %1485 = vmatprep.subr.bf16.mxu0 0
    %1486 = vmatpush1.bf16.msra.mxu0 0
    %1487 = vmatprep.subr.bf16.mxu0 0
    %1488 = vmatpush1.bf16.msra.mxu0 0
    %1489 = vmatprep.subr.bf16.mxu0 0
    %1490 = vmatpush1.bf16.msra.mxu0 0
    %1491 = vmatprep.subr.bf16.mxu0 0
    %1492 = vmatpush1.bf16.msra.mxu0 0
    %1493 = vmatprep.subr.bf16.mxu0 0
    %1494 = vmatpush1.bf16.msra.mxu0 0
    %1495 = vmatprep.subr.bf16.mxu0 0
    %1496 = vmatpush1.bf16.msra.mxu0 0
    %1497 = vmatprep.subr.bf16.mxu0 0
    %1498 = vmatpush1.bf16.msra.mxu0 0
    %1499 = vmatprep.subr.bf16.mxu0 0
    %1500 = vmatpush1.bf16.msra.mxu0 0
    %1501 = vmatprep.mubr.bf16.mxu0 0
    %1502 = vmatmul.mubr.bf16.gmra.mrb[0].mxu0 %v1467
    %v1503 = vpop.f32.mrb[0].mxu0
    %v1504 = vadd.f32 0.0, %v1503
    %v1505 = vpop.f32.mrb[0].mxu0
    %v1506 = vpop.f32.mrb[0].mxu0
    %v1507 = vpop.f32.mrb[0].mxu0
    %1508 = vdwg.mxu0
    %v1509 = vadd.f32 %v295, %v1504
    %v1510 = vxor.u32 %v1460, 2147483648
    %v1511 = vmul.f32 %v1510, 1.442695
    %v1512 = vpow.pop %v1511
    %v1513 = vadd.f32 %v1512, 1.0
    %v1514 = vrcp.pop %v1513
    %v1515 = vmul.f32 1.0, %v1514
    %v1516 = vtanh.pop %v1460
    %v1518 = vrot.slane %v1375, 6
    %v1520 = vmul.f32 %v1515, %v1518
    %1522 = vrot.lane.b32.xlu0 %v1516, 32
    %v1523 = vpop.permute.xlu0 %1522
    %v1525 = vmul.f32 %v1515, %v1523
    %1527 = vrot.lane.b32.xlu0 %v1525, 32
    %v1528 = vpop.permute.xlu0 %1527
    %v1530 = vadd.f32 %v1520, %v1528
    %v1531 = vtanh.pop %v1530
    %1533 = vrot.lane.b32.xlu0 %v1531, 32
    %v1534 = vpop.permute.xlu0 %1533
    %v1536 = vmul.f32 %v1515, %v1534
    %v1537 = vxor.u32 %v1509, 2147483648
    %v1538 = vmul.f32 %v1537, 1.442695
    %v1539 = vpow.pop %v1538
    %v1540 = vadd.f32 %v1539, 1.0
    %v1541 = vrcp.pop %v1540
    %v1542 = vmul.f32 1.0, %v1541
    %v1543 = vtanh.pop %v1509
    %v1545 = vrot.slane %v1402, 2
    %v1547 = vmul.f32 %v1542, %v1545
    %1549 = vrot.lane.b32.xlu0 %v1543, 32
    %v1550 = vpop.permute.xlu0 %1549
    %v1552 = vmul.f32 %v1542, %v1550
    %1554 = vrot.lane.b32.xlu0 %v1552, 32
    %v1555 = vpop.permute.xlu0 %1554
    %v1557 = vadd.f32 %v1547, %v1555
    %v1558 = vtanh.pop %v1557
    %1560 = vrot.lane.b32.xlu0 %v1558, 32
    %v1561 = vpop.permute.xlu0 %1560
    %v1563 = vmul.f32 %v1542, %v1561
    %1565 = vrot.lane.b32.xlu0 %v1536, 64
    %v1566 = vpop.permute.xlu0 %1565
    %v1568 = vrot.slane %v1536, 1
    %1569 = vrot.lane.b32.xlu0 %v1568, 96
    %v1570 = vpop.permute.xlu0 %1569
    %v1572 = vsel %vm321, %v1566, %v1570
    %1574 = vrot.lane.b32.xlu0 %v1563, 64
    %v1575 = vpop.permute.xlu0 %1574
    %v1577 = vrot.slane %v1563, 1
    %1578 = vrot.lane.b32.xlu0 %v1577, 96
    %v1579 = vpop.permute.xlu0 %1578
    %v1581 = vsel %vm321, %v1575, %v1579
    %v1583 = vrot.slane %v1572, 6
    %v1586 = vrot.slane %v1581, 7
    %v1588 = vsel %vm155, %v1583, %v1586
    %1590 = vrot.lane.b32.xlu0 %v445, 64
    %v1591 = vpop.permute.xlu0 %1590
    %1593 = vrot.lane.b32.xlu0 %v1563, 96
    %v1594 = vpop.permute.xlu0 %1593
    %v1596 = vsel %vm321, %v1591, %v1594
    %1598 = vrot.lane.b32.xlu0 %v599, 64
    %v1599 = vpop.permute.xlu0 %1598
    %1602 = vrot.lane.b32.xlu0 %v1408, 96
    %v1603 = vpop.permute.xlu0 %1602
    %v1605 = vsel %vm321, %v1599, %v1603
    %1607 = vrot.lane.b32.xlu0 %v757, 64
    %v1608 = vpop.permute.xlu0 %1607
    %1611 = vrot.lane.b32.xlu0 %v1250, 96
    %v1612 = vpop.permute.xlu0 %1611
    %v1614 = vsel %vm321, %v1608, %v1612
    %1616 = vrot.lane.b32.xlu0 %v912, 64
    %v1617 = vpop.permute.xlu0 %1616
    %1620 = vrot.lane.b32.xlu0 %v1093, 96
    %v1621 = vpop.permute.xlu0 %1620
    %v1623 = vsel %vm321, %v1617, %v1621
    %1625 = vrot.lane.b32.xlu0 %v1066, 64
    %v1626 = vpop.permute.xlu0 %1625
    %1629 = vrot.lane.b32.xlu0 %v939, 96
    %v1630 = vpop.permute.xlu0 %1629
    %v1632 = vsel %vm321, %v1626, %v1630
    %1634 = vrot.lane.b32.xlu0 %v1223, 64
    %v1635 = vpop.permute.xlu0 %1634
    %1638 = vrot.lane.b32.xlu0 %v784, 96
    %v1639 = vpop.permute.xlu0 %1638
    %v1641 = vsel %vm321, %v1635, %v1639
    %1643 = vrot.lane.b32.xlu0 %v1381, 64
    %v1644 = vpop.permute.xlu0 %1643
    %1647 = vrot.lane.b32.xlu0 %v626, 96
    %v1648 = vpop.permute.xlu0 %1647
    %v1650 = vsel %vm321, %v1644, %v1648
    %1652 = vrot.lane.b32.xlu0 %v469, 96
    %v1653 = vpop.permute.xlu0 %1652
    %v1655 = vsel %vm321, %v1566, %v1653
    %v1656 = vmul.f32 %v1596, %v1588
    %vm1657 = vcmask 517120
    %v1658 = vsel %vm1657, %v1656, 0.0
    %1659 = vadd.xlane.f32.xlu0 %v1658
    %v1660 = vpop.xlane.xlu0 %1659
    %v1662 = vrot.slane %v1588, 6
    %v1664 = vmul.f32 %v1605, %v1662
    %vm1665 = vcmask 519170
    %v1666 = vsel %vm1665, %v1664, 0.0
    %1667 = vadd.xlane.f32.xlu0 %v1666
    %v1668 = vpop.xlane.xlu0 %1667
    %v1669 = vrot.slane %v1588, 4
    %v1671 = vmul.f32 %v1614, %v1669
    %vm1672 = vcmask 521220
    %v1673 = vsel %vm1672, %v1671, 0.0
    %1674 = vadd.xlane.f32.xlu0 %v1673
    %v1675 = vpop.xlane.xlu0 %1674
    %v1676 = vrot.slane %v1588, 2
    %v1678 = vmul.f32 %v1623, %v1676
    %vm1679 = vcmask 523270
    %v1680 = vsel %vm1679, %v1678, 0.0
    %1681 = vadd.xlane.f32.xlu0 %v1680
    %v1682 = vpop.xlane.xlu0 %1681
    %v1683 = vmul.f32 %v1632, %v1588
    %v1684 = vsel %vm1657, %v1683, 0.0
    %1685 = vadd.xlane.f32.xlu0 %v1684
    %v1686 = vpop.xlane.xlu0 %1685
    %v1687 = vmul.f32 %v1641, %v1662
    %v1688 = vsel %vm1665, %v1687, 0.0
    %1689 = vadd.xlane.f32.xlu0 %v1688
    %v1690 = vpop.xlane.xlu0 %1689
    %v1691 = vmul.f32 %v1650, %v1669
    %v1692 = vsel %vm1672, %v1691, 0.0
    %1693 = vadd.xlane.f32.xlu0 %v1692
    %v1694 = vpop.xlane.xlu0 %1693
    %v1695 = vmul.f32 %v1655, %v1676
    %v1696 = vsel %vm1679, %v1695, 0.0
    %1697 = vadd.xlane.f32.xlu0 %v1696
    %v1698 = vpop.xlane.xlu0 %1697
    %v1700 = vrot.slane %v1668, 2
    %v1703 = vrot.slane %v1675, 4
    %v1706 = vrot.slane %v1682, 6
    %v1709 = vrot.slane %v1690, 2
    %v1712 = vrot.slane %v1694, 4
    %v1715 = vrot.slane %v1698, 6
    %vm1717 = vcmask 7168
    %v1718 = vsel %vm1717, %v1660, %v1700
    %vm1719 = vcmask 15360
    %v1720 = vsel %vm1719, %v1718, %v1703
    %vm1721 = vcmask 23552
    %v1722 = vsel %vm1721, %v1720, %v1706
    %vm1723 = vcmask 31744
    %v1724 = vsel %vm1723, %v1722, %v1686
    %vm1725 = vcmask 39936
    %v1726 = vsel %vm1725, %v1724, %v1709
    %vm1727 = vcmask 48128
    %v1728 = vsel %vm1727, %v1726, %v1712
    %vm1729 = vcmask 56320
    %v1730 = vsel %vm1729, %v1728, %v1715
    %vm1731 = vcmask 58368
    %v1732 = vsel %vm1731, %v1730, -inf
    %1733 = vmax.xlane.f32.xlu0 %v1732
    %v1734 = vpop.xlane.xlu0 %1733
    %v1735 = vsub.f32 %v1730, %v1734
    %v1736 = vmul.f32 %v1735, 1.442695
    %v1737 = vpow.pop %v1736
    %v1738 = vsel %vm1731, %v1737, 0.0
    %1739 = vadd.xlane.f32.xlu0 %v1738
    %v1740 = vpop.xlane.xlu0 %1739
    %v1741 = vrcp.pop %v1740
    %v1742 = vmul.f32 %v1737, %v1741
    %1744 = vset.pattern.permute.xlu0 0
    %1745 = vperm.xlu0 %1744, %v1742
    %v1746 = vpop.permute.xlu0 %1745
    %v1748 = vmul.f32 %v1596, %v1746
    %1749 = vset.pattern.permute.xlu0 1
    %1750 = vperm.xlu0 %1749, %v1742
    %v1751 = vpop.permute.xlu0 %1750
    %v1752 = vrot.slane %v1751, 6
    %v1754 = vmul.f32 %v1605, %v1752
    %v1756 = vrot.slane %v1754, 2
    %v1758 = vadd.f32 %v1748, %v1756
    %1759 = vset.pattern.permute.xlu0 2
    %1760 = vperm.xlu0 %1759, %v1742
    %v1761 = vpop.permute.xlu0 %1760
    %v1762 = vrot.slane %v1761, 4
    %v1764 = vmul.f32 %v1614, %v1762
    %v1766 = vrot.slane %v1764, 4
    %v1768 = vadd.f32 %v1758, %v1766
    %1769 = vset.pattern.permute.xlu0 3
    %1770 = vperm.xlu0 %1769, %v1742
    %v1771 = vpop.permute.xlu0 %1770
    %v1772 = vrot.slane %v1771, 2
    %v1774 = vmul.f32 %v1623, %v1772
    %v1776 = vrot.slane %v1774, 6
    %v1778 = vadd.f32 %v1768, %v1776
    %1779 = vset.pattern.permute.xlu0 4
    %1780 = vperm.xlu0 %1779, %v1742
    %v1781 = vpop.permute.xlu0 %1780
    %v1783 = vmul.f32 %v1632, %v1781
    %v1784 = vadd.f32 %v1778, %v1783
    %1785 = vset.pattern.permute.xlu0 5
    %1786 = vperm.xlu0 %1785, %v1742
    %v1787 = vpop.permute.xlu0 %1786
    %v1788 = vrot.slane %v1787, 6
    %v1790 = vmul.f32 %v1641, %v1788
    %v1792 = vrot.slane %v1790, 2
    %v1794 = vadd.f32 %v1784, %v1792
    %1795 = vset.pattern.permute.xlu0 6
    %1796 = vperm.xlu0 %1795, %v1742
    %v1797 = vpop.permute.xlu0 %1796
    %v1798 = vrot.slane %v1797, 4
    %v1800 = vmul.f32 %v1650, %v1798
    %v1802 = vrot.slane %v1800, 4
    %v1804 = vadd.f32 %v1794, %v1802
    %1805 = vset.pattern.permute.xlu0 7
    %1806 = vperm.xlu0 %1805, %v1742
    %v1807 = vpop.permute.xlu0 %1806
    %v1808 = vrot.slane %v1807, 2
    %v1810 = vmul.f32 %v1655, %v1808
    %v1812 = vrot.slane %v1810, 6
    %v1814 = vadd.f32 %v1804, %v1812
    %v1815 = vpack.c.bf16 %v1814, %v1814
    %v1816 = vld [vmem:[%s6] sm:$0xf]
    %v1817 = vld [vmem:[%s6 + $0x4] sm:$0xf]
    %v1818 = vld [vmem:[%s6 + $0x8] sm:$0xf]
    %v1819 = vld [vmem:[%s6 + $0xc] sm:$0xf]
    %v1820 = vld [vmem:[%s6 + $0x10] sm:$0xf]
    %v1821 = vld [vmem:[%s6 + $0x14] sm:$0xf]
    %v1822 = vld [vmem:[%s6 + $0x18] sm:$0xf]
    %v1823 = vld [vmem:[%s6 + $0x1c] sm:$0xf]
    %v1824 = vld [vmem:[#allocation9] sm:$0x1]
    %v1826 = vlaneseq
    %v1827 = vshrl.u32 %v1826, 7
    %v1828 = vsub.s32 0, %v1827
    %v1829 = vrot.slane %v1824, %v1828
    %v1839 = vunpack.c.l.b16 %v1816
    %v1840 = vunpack.c.l.b16 %v1817
    %v1841 = vunpack.c.l.b16 %v1818
    %v1842 = vunpack.c.l.b16 %v1819
    %v1843 = vunpack.c.l.b16 %v1820
    %v1844 = vunpack.c.l.b16 %v1821
    %v1845 = vunpack.c.l.b16 %v1822
    %v1846 = vunpack.c.l.b16 %v1823
    %v1847 = vpack.c.b16 %v1840, %v1839
    %v1848 = vpack.c.b16 %v1842, %v1841
    %v1849 = vpack.c.b16 %v1844, %v1843
    %v1850 = vpack.c.b16 %v1846, %v1845
    %vm1855 = vcmask 523264
    %v1857 = vsel %vm1855, %v1815, 0
    %1859 = vmatprep.subr.bf16.mxu0 0
    %1860 = vmatpush1.bf16.msra.mxu0 %v1847
    %1861 = vmatprep.subr.bf16.mxu0 0
    %1862 = vmatpush1.bf16.msra.mxu0 %v1848
    %1863 = vmatprep.subr.bf16.mxu0 0
    %1864 = vmatpush1.bf16.msra.mxu0 %v1849
    %1865 = vmatprep.subr.bf16.mxu0 0
    %1866 = vmatpush1.bf16.msra.mxu0 %v1850
    %1867 = vmatprep.subr.bf16.mxu0 0
    %1868 = vmatpush1.bf16.msra.mxu0 0
    %1869 = vmatprep.subr.bf16.mxu0 0
    %1870 = vmatpush1.bf16.msra.mxu0 0
    %1871 = vmatprep.subr.bf16.mxu0 0
    %1872 = vmatpush1.bf16.msra.mxu0 0
    %1873 = vmatprep.subr.bf16.mxu0 0
    %1874 = vmatpush1.bf16.msra.mxu0 0
    %1875 = vmatprep.subr.bf16.mxu0 0
    %1876 = vmatpush1.bf16.msra.mxu0 0
    %1877 = vmatprep.subr.bf16.mxu0 0
    %1878 = vmatpush1.bf16.msra.mxu0 0
    %1879 = vmatprep.subr.bf16.mxu0 0
    %1880 = vmatpush1.bf16.msra.mxu0 0
    %1881 = vmatprep.subr.bf16.mxu0 0
    %1882 = vmatpush1.bf16.msra.mxu0 0
    %1883 = vmatprep.subr.bf16.mxu0 0
    %1884 = vmatpush1.bf16.msra.mxu0 0
    %1885 = vmatprep.subr.bf16.mxu0 0
    %1886 = vmatpush1.bf16.msra.mxu0 0
    %1887 = vmatprep.subr.bf16.mxu0 0
    %1888 = vmatpush1.bf16.msra.mxu0 0
    %1889 = vmatprep.subr.bf16.mxu0 0
    %1890 = vmatpush1.bf16.msra.mxu0 0
    %1891 = vmatprep.mubr.bf16.mxu0 0
    %1892 = vmatmul.mubr.bf16.gmra.mrb[0].mxu0 %v1857
    %v1893 = vpop.f32.mrb[0].mxu0
    %v1894 = vadd.f32 %v1829, %v1893
    %v1895 = vpop.f32.mrb[0].mxu0
    %v1896 = vpop.f32.mrb[0].mxu0
    %v1897 = vpop.f32.mrb[0].mxu0
    %1898 = vdwg.mxu0
    %vm1899 = vcmask 9216
    %1900 = vst.msk [vmem:[#allocation10] sm:$0x3] %vm1899, %v1894
    %1901 = vst.msk [vmem:[#allocation11] sm:$0x3] %vm1731, %v1742
    // Predicated region
    $region42: #{bilstm_attention_forward.1} parent=1 // pred_check
      _
    $region43: #{bilstm_attention_forward.1} parent=1 // pred_check_branch
      %1903 = sbr.rel (0) target = $region45
    $region44: #{bilstm_attention_forward.1} parent=1 // pred_region
      %s1905 = ssub.s32 32, 32
      %1906 = vsyncadd [#allocation6], %s1905
      %s1908 = sshll.u32 [#allocation10], 4
      %s1909 = int_to_ptr.vmem [resolvable:$true] %s1908
      %1911 = dma.vmem_to_hbm [thread:$0]  %s1909, 32, %s8, [#allocation6]
    $region45: #{bilstm_attention_forward.1} parent=1 // pred_fallthru
      _
    // Predicated region
    $region46: #{bilstm_attention_forward.1} parent=1 // pred_check
      _
    $region47: #{bilstm_attention_forward.1} parent=1 // pred_check_branch
      %1913 = sbr.rel (0) target = $region49
    $region48: #{bilstm_attention_forward.1} parent=1 // pred_region
      %s1915 = ssub.s32 32, 32
      %1916 = vsyncadd [#allocation12], %s1915
      %s1918 = sshll.u32 [#allocation11], 4
      %s1919 = int_to_ptr.vmem [resolvable:$true] %s1918
      %1921 = dma.vmem_to_hbm [thread:$0]  %s1919, 32, %s9, [#allocation12]
    $region49: #{bilstm_attention_forward.1} parent=1 // pred_fallthru
      _
    // Predicated region
    $region50: #{bilstm_attention_forward.1} parent=1 // pred_check
      _
    $region51: #{bilstm_attention_forward.1} parent=1 // pred_check_branch
      %1923 = sbr.rel (0) target = $region53
    $region52: #{bilstm_attention_forward.1} parent=1 // pred_region
      %1924 = dma.done [#allocation6], 32
    $region53: #{bilstm_attention_forward.1} parent=1 // pred_fallthru
      _
    // Predicated region
    $region54: #{bilstm_attention_forward.1} parent=1 // pred_check
      _
    $region55: #{bilstm_attention_forward.1} parent=1 // pred_check_branch
      %1926 = sbr.rel (0) target = $region57
    $region56: #{bilstm_attention_forward.1} parent=1 // pred_region
      %1927 = dma.done [#allocation12], 32
    $region57: #{bilstm_attention_forward.1} parent=1 // pred_fallthru
      _
    %1928 = vsyncpa [#allocation5], 1
    %1929 = vsyncpa [#allocation8], 1
    %1930 = vsyncpa [#allocation6], 1
    %1931 = vsyncpa [#allocation12], 1

</llo_original>
